<compile_context>
chip_gen: v7x
topology: tpu7x:2x2x1
jax: 0.10.0
libtpu: 0.0.40
codegen_flags: <defaults>
</compile_context>

<pallas_src>
import jax
import jax.numpy as jnp
from jax import lax
from jax.experimental import pallas as pl
from jax.experimental.pallas import tpu as pltpu


def actionnet_kernel(x_ref, mask_ref, w1_ref, b1_ref, w2_ref, b2_ref, out_ref):
    x = x_ref[...]                                    # (TM, D)  bf16 or f32
    mask = mask_ref[...]                              # (1, TM)  f32

    # Hidden layer: MXU matmul with f32 accumulation, bias, ReLU.
    h = jnp.dot(x, w1_ref[...], preferred_element_type=jnp.float32)   # (TM, H)
    h = jnp.maximum(h + b1_ref[...], 0.0)

    # Final layer, lane-dense:  z[0, r] = sum_k w2[k] * h[r, k]   -> (1, TM)
    z = lax.dot_general(
        w2_ref[...], h,
        dimension_numbers=(((1,), (1,)), ((), ())),
        preferred_element_type=jnp.float32)

    # Exact mask algebra (mask is a per-row scalar):
    #   ((relu * m) @ w2 + b2) * m  ==  m*m*(relu @ w2) + b2*m
    b2 = b2_ref[0, 0]
    out_ref[...] = (mask * mask * z + b2 * mask).astype(out_ref.dtype)


def actionnet_forward(inputs, mask, w1, b1, w2, b2, *, tm=1024, use_bf16=True):
    """inputs: (B, A, D) float32, mask: (B, A) float32 -> (B, A) float32."""
    B, A, D = inputs.shape
    H = w1.shape[1]
    M = B * A
    assert tm % 128 == 0, "row tile must be a multiple of 128 (lane-dense output)"

    n_tiles = pl.cdiv(M, tm)
    M_pad = n_tiles * tm

    x2d = inputs.reshape(M, D)
    m1d = mask.reshape(M).astype(jnp.float32)
    if M_pad != M:
        x2d = jnp.pad(x2d, ((0, M_pad - M), (0, 0)))
        m1d = jnp.pad(m1d, (0, M_pad - M))
    mask_rows = m1d.reshape(n_tiles, tm)

    compute_dtype = jnp.bfloat16 if use_bf16 else jnp.float32
    x2d = x2d.astype(compute_dtype)
    w1c = w1.astype(compute_dtype)

    b1_2d = b1.reshape(1, H).astype(jnp.float32)
    w2_row = w2.reshape(1, H).astype(jnp.float32)   # (H, 1) -> (1, H)
    b2_2d = b2.reshape(1, 1).astype(jnp.float32)

    out = pl.pallas_call(
        actionnet_kernel,
        out_shape=jax.ShapeDtypeStruct((n_tiles, tm), jnp.float32),
        grid_spec=pltpu.PrefetchScalarGridSpec(
            num_scalar_prefetch=0,
            grid=(n_tiles,),
            in_specs=[
                pl.BlockSpec((tm, D), lambda i: (i, 0)),     # x row tile
                pl.BlockSpec((1, tm), lambda i: (i, 0)),     # mask row (lane-dense)
                pl.BlockSpec((D, H), lambda i: (0, 0)),      # W1 (resident)
                pl.BlockSpec((1, H), lambda i: (0, 0)),      # b1
                pl.BlockSpec((1, H), lambda i: (0, 0)),      # w2 row
                pl.BlockSpec(memory_space=pltpu.MemorySpace.SMEM),  # b2 scalar
            ],
            out_specs=pl.BlockSpec((1, tm), lambda i: (i, 0)),
        ),
        compiler_params=pltpu.CompilerParams(
            dimension_semantics=("parallel",)),
    )(x2d, mask_rows, w1c, b1_2d, w2_row, b2_2d)

    return out.reshape(M_pad)[:M].reshape(B, A)


def init_params(key, hidden, num_inputs):
    """Deterministic init mimicking PyTorch Linear default (U[-1/sqrt(fan_in), +])."""
    d_in = hidden * num_inputs
    k1, k2, k3, k4 = jax.random.split(key, 4)
    bound1 = 1.0 / jnp.sqrt(d_in)
    bound2 = 1.0 / jnp.sqrt(hidden)
    w1 = jax.random.uniform(k1, (d_in, hidden), jnp.float32, -bound1, bound1)
    b1 = jax.random.uniform(k2, (hidden,), jnp.float32, -bound1, bound1)
    w2 = jax.random.uniform(k3, (hidden, 1), jnp.float32, -bound2, bound2)
    b2 = jax.random.uniform(k4, (1,), jnp.float32, -bound2, bound2)
    return w1, b1, w2, b2


def actionnet_ref(inputs, mask, w1, b1, w2, b2):
    """Pure-JAX reference matching the PyTorch forward."""
    h = jnp.maximum(inputs @ w1 + b1, 0.0) * mask[..., None]
    return (h @ w2 + b2[None, None, :]).squeeze(-1) * mask


if __name__ == "__main__":
    hidden = 32
    num_inputs = 4
    batch = 2
    num_actions = 8          # leading "sequence" dim the mask runs over
    D = hidden * num_inputs  # 128

    key = jax.random.PRNGKey(0)
    kx, km, kp = jax.random.split(key, 3)

    inputs = jax.random.normal(kx, (batch, num_actions, D), jnp.float32)
    mask = (jax.random.uniform(km, (batch, num_actions)) > 0.3).astype(jnp.float32)
    w1, b1, w2, b2 = init_params(kp, hidden, num_inputs)

    ref = actionnet_ref(inputs, mask, w1, b1, w2, b2)

    # Full-precision path: tight check against the reference.
    out_f32 = jax.block_until_ready(
        actionnet_forward(inputs, mask, w1, b1, w2, b2, use_bf16=False))
    assert out_f32.shape == (batch, num_actions)
    assert jnp.allclose(out_f32, ref, atol=1e-4, rtol=1e-4)

    # bf16-input fast path (default): tolerance relaxed for input rounding only
    # (accumulation stays f32).
    out_bf16 = jax.block_until_ready(
        actionnet_forward(inputs, mask, w1, b1, w2, b2, use_bf16=True))
    assert out_bf16.shape == (batch, num_actions)
    assert jnp.allclose(out_bf16, ref, atol=2e-2, rtol=2e-2)

    print("KERNEL_OK")
</pallas_src>

<mosaic_0001>
module attributes {stable_mosaic.version = 11 : i64} {
  func.func @actionnet_kernel(%arg0: i32, %arg1: memref<1024x128xf32, #tpu.memory_space<vmem>>, %arg2: memref<1x1024xf32, #tpu.memory_space<vmem>>, %arg3: memref<128x32xf32, #tpu.memory_space<vmem>>, %arg4: memref<1x32xf32, #tpu.memory_space<vmem>>, %arg5: memref<1x32xf32, #tpu.memory_space<vmem>>, %arg6: memref<1x1xf32, #tpu.memory_space<smem>>, %arg7: memref<1x1024xf32, #tpu.memory_space<vmem>>) attributes {dimension_semantics = [#tpu.dimension_semantics<parallel>], iteration_bounds = array<i64: 1>, scalar_prefetch = 0 : i64, scratch_operands = 0 : i64, tpu.core_type = #tpu.core_type<tc>, window_params = [{transform_indices = @transform_0, window_bounds = array<i64: 1024, 128>}, {transform_indices = @transform_1, window_bounds = array<i64: 1, 1024>}, {pipeline_mode = #tpu.pipeline_mode<synchronous>, transform_indices = @transform_2, window_bounds = array<i64: 128, 32>}, {pipeline_mode = #tpu.pipeline_mode<synchronous>, transform_indices = @transform_3, window_bounds = array<i64: 1, 32>}, {pipeline_mode = #tpu.pipeline_mode<synchronous>, transform_indices = @transform_4, window_bounds = array<i64: 1, 32>}, {transform_indices = @transform_5, window_bounds = array<i64: 1, 1>}, {transform_indices = @transform_6, window_bounds = array<i64: 1, 1024>}]} {
    %c0 = arith.constant 0 : index
    %c0_0 = arith.constant 0 : index
    %0 = vector.load %arg1[%c0, %c0_0] : memref<1024x128xf32, #tpu.memory_space<vmem>>, vector<1024x128xf32>
    %c0_1 = arith.constant 0 : index
    %c0_2 = arith.constant 0 : index
    %1 = vector.load %arg2[%c0_1, %c0_2] : memref<1x1024xf32, #tpu.memory_space<vmem>>, vector<1x1024xf32>
    %c0_3 = arith.constant 0 : index
    %c0_4 = arith.constant 0 : index
    %2 = vector.load %arg3[%c0_3, %c0_4] : memref<128x32xf32, #tpu.memory_space<vmem>>, vector<128x32xf32>
    %cst = arith.constant dense<0.000000e+00> : vector<1024x32xf32>
    %3 = tpu.matmul %0, %2, %cst {dimension_numbers = #tpu.dot_dimension_numbers<[1], [0], [0], [1], [0, 0, 1, 1], [], []>} : vector<1024x128xf32>, vector<128x32xf32>, vector<1024x32xf32> -> vector<1024x32xf32>
    %c0_5 = arith.constant 0 : index
    %c0_6 = arith.constant 0 : index
    %4 = vector.load %arg4[%c0_5, %c0_6] : memref<1x32xf32, #tpu.memory_space<vmem>>, vector<1x32xf32>
    %5 = vector.broadcast %4 : vector<1x32xf32> to vector<1024x32xf32>
    %6 = arith.addf %3, %5 : vector<1024x32xf32>
    %cst_7 = arith.constant 0.000000e+00 : f32
    %7 = vector.broadcast %cst_7 : f32 to vector<1024x32xf32>
    %8 = arith.maximumf %6, %7 : vector<1024x32xf32>
    %c0_8 = arith.constant 0 : index
    %c0_9 = arith.constant 0 : index
    %9 = vector.load %arg5[%c0_8, %c0_9] : memref<1x32xf32, #tpu.memory_space<vmem>>, vector<1x32xf32>
    %cst_10 = arith.constant dense<0.000000e+00> : vector<1x1024xf32>
    %10 = tpu.matmul %9, %8, %cst_10 {dimension_numbers = #tpu.dot_dimension_numbers<[1], [1], [0], [0], [0, 0, 1, 0], [], []>} : vector<1x32xf32>, vector<1024x32xf32>, vector<1x1024xf32> -> vector<1x1024xf32>
    %c0_11 = arith.constant 0 : index
    %c0_12 = arith.constant 0 : index
    %11 = memref.load %arg6[%c0_11, %c0_12] : memref<1x1xf32, #tpu.memory_space<smem>>
    %12 = arith.mulf %1, %1 : vector<1x1024xf32>
    %13 = arith.mulf %12, %10 : vector<1x1024xf32>
    %14 = vector.broadcast %11 : f32 to vector<1x1024xf32>
    %15 = arith.mulf %14, %1 : vector<1x1024xf32>
    %16 = arith.addf %13, %15 : vector<1x1024xf32>
    %c0_13 = arith.constant 0 : index
    %c0_14 = arith.constant 0 : index
    %17 = vector.load %arg7[%c0_13, %c0_14] : memref<1x1024xf32, #tpu.memory_space<vmem>>, vector<1x1024xf32>
    tpu.vector_store %arg7[%c0_13, %c0_14], %16 {strides = array<i32>} : memref<1x1024xf32, #tpu.memory_space<vmem>>, vector<1x1024xf32>,
    return
  }
  func.func @transform_0(%arg0: i32) -> (i32, i32) {
    %c0_i32 = arith.constant 0 : i32
    %c0_i32_0 = arith.constant 0 : i32
    return %arg0, %c0_i32 : i32, i32
  }
  func.func @transform_1(%arg0: i32) -> (i32, i32) {
    %c0_i32 = arith.constant 0 : i32
    %c0_i32_0 = arith.constant 0 : i32
    return %arg0, %c0_i32 : i32, i32
  }
  func.func @transform_2(%arg0: i32) -> (i32, i32) {
    %c0_i32 = arith.constant 0 : i32
    %c0_i32_0 = arith.constant 0 : i32
    %c0_i32_1 = arith.constant 0 : i32
    return %c0_i32, %c0_i32_0 : i32, i32
  }
  func.func @transform_3(%arg0: i32) -> (i32, i32) {
    %c0_i32 = arith.constant 0 : i32
    %c0_i32_0 = arith.constant 0 : i32
    %c0_i32_1 = arith.constant 0 : i32
    return %c0_i32, %c0_i32_0 : i32, i32
  }
  func.func @transform_4(%arg0: i32) -> (i32, i32) {
    %c0_i32 = arith.constant 0 : i32
    %c0_i32_0 = arith.constant 0 : i32
    %c0_i32_1 = arith.constant 0 : i32
    return %c0_i32, %c0_i32_0 : i32, i32
  }
  func.func @transform_5(%arg0: i32) -> (i32, i32) {
    %c0_i32 = arith.constant 0 : i32
    %c0_i32_0 = arith.constant 0 : i32
    %c0_i32_1 = arith.constant 0 : i32
    return %c0_i32, %c0_i32_0 : i32, i32
  }
  func.func @transform_6(%arg0: i32) -> (i32, i32) {
    %c0_i32 = arith.constant 0 : i32
    %c0_i32_0 = arith.constant 0 : i32
    return %arg0, %c0_i32 : i32, i32
  }
}

</mosaic_0001>

<llo_original>
// kernel: tpu_custom_call.1
$region0: #{tpu_custom_call.1}
  #allocation0 [shape = 'u32[]', space=smem, size = 0x4, offset = 0x4, fixed_abs, tag = 'smem constant byte address 0x4 - core index']
  #allocation1 [shape = 'u32[144,128]{1,0:T(1,128)}', space=vmem, size = 0x12000, scoped, tag = 'internal scratch']
  #allocation2 [shape = 'f32[1,1]{1,0:T(1,128)S(6)}', space=smem, size = 0x200, scoped, tag = 'scoped memory for tpu_custom_call.1']
  %s0 = inlined_call_operand.hbm [shape: f32[1024,128], index: 0, kind: input, shape index: {}]
  %s1 = inlined_call_operand.vmem [shape: f32[1,1024], index: 1, kind: input, shape index: {}]
  %s2 = inlined_call_operand.vmem [shape: f32[128,32], index: 2, kind: input, shape index: {}]
  %s3 = inlined_call_operand.vmem [shape: f32[1,32], index: 3, kind: input, shape index: {}]
  %s4 = inlined_call_operand.vmem [shape: f32[1,32], index: 4, kind: input, shape index: {}]
  %s5 = inlined_call_operand.<no memory space> [shape: f32[1,1], index: 5, kind: input, shape index: {}]
  %s6 = inlined_call_operand.hbm [shape: f32[1,1024], index: 6, kind: output, shape index: {}]
  %s7 = sld [smem:[#allocation0]]
  $region38: #{tpu_custom_call.1} parent=0
    _
  %s9 = ssub.s32 1, %s7
  %s10 = scalar_select 0, %s9, %s7
  %11 = sst [smem:[#allocation2]] %s5
  $region1: #{tpu_custom_call.1} parent=0
    #allocation3 [shape = 'u8[524288]{0}', space=vmem, size = 0x80000, scoped, tag = 'input window, operand 0, single buffered']
    #allocation4 [shape = 's32[1]{0}', space=sflag, size = 0x4, scoped, tag = 'scoped memory for tpu_custom_call.1']
    #allocation5 [shape = 's32[1]{0}', space=sflag, size = 0x4, scoped, tag = 'scoped memory for tpu_custom_call.1']
    #allocation6 [shape = 'u8[4096]{0}', space=vmem, size = 0x1000, scoped, tag = 'output window, operand 0, single buffered']
    %12 = vsyncpa [#allocation4], 0
    %13 = vsyncpa [#allocation5], 0
    // Predicated region
    $region2: #{tpu_custom_call.1} parent=1 // pred_check
      _
    $region3: #{tpu_custom_call.1} parent=1 // pred_check_branch
      %15 = sbr.rel (0) target = $region5
    $region4: #{tpu_custom_call.1} parent=1 // pred_region
      %s17 = ssub.s32 16384, 16384
      %18 = vsyncadd [#allocation4], %s17
      %s19 = sshll.u32 [#allocation3], 4
      %s20 = int_to_ptr.vmem [resolvable:$true] %s19
      %25 = dma.hbm_to_vmem [thread:$0]  %s0, 16384, %s20, [#allocation4], 128, 128, 8
    $region5: #{tpu_custom_call.1} parent=1 // pred_fallthru
      _
    // Predicated region
    $region6: #{tpu_custom_call.1} parent=1 // pred_check
      _
    $region7: #{tpu_custom_call.1} parent=1 // pred_check_branch
      %27 = sbr.rel (0) target = $region9
    $region8: #{tpu_custom_call.1} parent=1 // pred_region
      _
    $region9: #{tpu_custom_call.1} parent=1 // pred_fallthru
      _
    // Predicated region
    $region10: #{tpu_custom_call.1} parent=1 // pred_check
      _
    $region11: #{tpu_custom_call.1} parent=1 // pred_check_branch
      %29 = sbr.rel (0) target = $region13
    $region12: #{tpu_custom_call.1} parent=1 // pred_region
      _
    $region13: #{tpu_custom_call.1} parent=1 // pred_fallthru
      _
    // Predicated region
    $region14: #{tpu_custom_call.1} parent=1 // pred_check
      _
    $region15: #{tpu_custom_call.1} parent=1 // pred_check_branch
      %31 = sbr.rel (0) target = $region17
    $region16: #{tpu_custom_call.1} parent=1 // pred_region
      _
    $region17: #{tpu_custom_call.1} parent=1 // pred_fallthru
      _
    // Predicated region
    $region18: #{tpu_custom_call.1} parent=1 // pred_check
      _
    $region19: #{tpu_custom_call.1} parent=1 // pred_check_branch
      %33 = sbr.rel (0) target = $region21
    $region20: #{tpu_custom_call.1} parent=1 // pred_region
      _
    $region21: #{tpu_custom_call.1} parent=1 // pred_fallthru
      _
    // Predicated region
    $region22: #{tpu_custom_call.1} parent=1 // pred_check
      _
    $region23: #{tpu_custom_call.1} parent=1 // pred_check_branch
      %35 = sbr.rel (0) target = $region25
    $region24: #{tpu_custom_call.1} parent=1 // pred_region
      _
    $region25: #{tpu_custom_call.1} parent=1 // pred_fallthru
      _
    // Predicated region
    $region26: #{tpu_custom_call.1} parent=1 // pred_check
      _
    $region27: #{tpu_custom_call.1} parent=1 // pred_check_branch
      %37 = sbr.rel (0) target = $region29
    $region28: #{tpu_custom_call.1} parent=1 // pred_region
      %38 = dma.done [#allocation4], 16384
    $region29: #{tpu_custom_call.1} parent=1 // pred_fallthru
      _
    %v39 = vld [vmem:[#allocation3] sm:$0xff]
    %v40 = vld [vmem:[#allocation3 + $0x8] sm:$0xff]
    %v41 = vld [vmem:[#allocation3 + $0x10] sm:$0xff]
    %v42 = vld [vmem:[#allocation3 + $0x18] sm:$0xff]
    %v43 = vld [vmem:[#allocation3 + $0x20] sm:$0xff]
    %v44 = vld [vmem:[#allocation3 + $0x28] sm:$0xff]
    %v45 = vld [vmem:[#allocation3 + $0x30] sm:$0xff]
    %v46 = vld [vmem:[#allocation3 + $0x38] sm:$0xff]
    %v47 = vld [vmem:[#allocation3 + $0x40] sm:$0xff]
    %v48 = vld [vmem:[#allocation3 + $0x48] sm:$0xff]
    %v49 = vld [vmem:[#allocation3 + $0x50] sm:$0xff]
    %v50 = vld [vmem:[#allocation3 + $0x58] sm:$0xff]
    %v51 = vld [vmem:[#allocation3 + $0x60] sm:$0xff]
    %v52 = vld [vmem:[#allocation3 + $0x68] sm:$0xff]
    %v53 = vld [vmem:[#allocation3 + $0x70] sm:$0xff]
    %v54 = vld [vmem:[#allocation3 + $0x78] sm:$0xff]
    %v55 = vld [vmem:[#allocation3 + $0x80] sm:$0xff]
    %v56 = vld [vmem:[#allocation3 + $0x88] sm:$0xff]
    %v57 = vld [vmem:[#allocation3 + $0x90] sm:$0xff]
    %v58 = vld [vmem:[#allocation3 + $0x98] sm:$0xff]
    %v59 = vld [vmem:[#allocation3 + $0xa0] sm:$0xff]
    %v60 = vld [vmem:[#allocation3 + $0xa8] sm:$0xff]
    %v61 = vld [vmem:[#allocation3 + $0xb0] sm:$0xff]
    %v62 = vld [vmem:[#allocation3 + $0xb8] sm:$0xff]
    %v63 = vld [vmem:[#allocation3 + $0xc0] sm:$0xff]
    %v64 = vld [vmem:[#allocation3 + $0xc8] sm:$0xff]
    %v65 = vld [vmem:[#allocation3 + $0xd0] sm:$0xff]
    %v66 = vld [vmem:[#allocation3 + $0xd8] sm:$0xff]
    %v67 = vld [vmem:[#allocation3 + $0xe0] sm:$0xff]
    %v68 = vld [vmem:[#allocation3 + $0xe8] sm:$0xff]
    %v69 = vld [vmem:[#allocation3 + $0xf0] sm:$0xff]
    %v70 = vld [vmem:[#allocation3 + $0xf8] sm:$0xff]
    %v71 = vld [vmem:[#allocation3 + $0x100] sm:$0xff]
    %v72 = vld [vmem:[#allocation3 + $0x108] sm:$0xff]
    %v73 = vld [vmem:[#allocation3 + $0x110] sm:$0xff]
    %v74 = vld [vmem:[#allocation3 + $0x118] sm:$0xff]
    %v75 = vld [vmem:[#allocation3 + $0x120] sm:$0xff]
    %v76 = vld [vmem:[#allocation3 + $0x128] sm:$0xff]
    %v77 = vld [vmem:[#allocation3 + $0x130] sm:$0xff]
    %v78 = vld [vmem:[#allocation3 + $0x138] sm:$0xff]
    %v79 = vld [vmem:[#allocation3 + $0x140] sm:$0xff]
    %v80 = vld [vmem:[#allocation3 + $0x148] sm:$0xff]
    %v81 = vld [vmem:[#allocation3 + $0x150] sm:$0xff]
    %v82 = vld [vmem:[#allocation3 + $0x158] sm:$0xff]
    %v83 = vld [vmem:[#allocation3 + $0x160] sm:$0xff]
    %v84 = vld [vmem:[#allocation3 + $0x168] sm:$0xff]
    %v85 = vld [vmem:[#allocation3 + $0x170] sm:$0xff]
    %v86 = vld [vmem:[#allocation3 + $0x178] sm:$0xff]
    %v87 = vld [vmem:[#allocation3 + $0x180] sm:$0xff]
    %v88 = vld [vmem:[#allocation3 + $0x188] sm:$0xff]
    %v89 = vld [vmem:[#allocation3 + $0x190] sm:$0xff]
    %v90 = vld [vmem:[#allocation3 + $0x198] sm:$0xff]
    %v91 = vld [vmem:[#allocation3 + $0x1a0] sm:$0xff]
    %v92 = vld [vmem:[#allocation3 + $0x1a8] sm:$0xff]
    %v93 = vld [vmem:[#allocation3 + $0x1b0] sm:$0xff]
    %v94 = vld [vmem:[#allocation3 + $0x1b8] sm:$0xff]
    %v95 = vld [vmem:[#allocation3 + $0x1c0] sm:$0xff]
    %v96 = vld [vmem:[#allocation3 + $0x1c8] sm:$0xff]
    %v97 = vld [vmem:[#allocation3 + $0x1d0] sm:$0xff]
    %v98 = vld [vmem:[#allocation3 + $0x1d8] sm:$0xff]
    %v99 = vld [vmem:[#allocation3 + $0x1e0] sm:$0xff]
    %v100 = vld [vmem:[#allocation3 + $0x1e8] sm:$0xff]
    %v101 = vld [vmem:[#allocation3 + $0x1f0] sm:$0xff]
    %v102 = vld [vmem:[#allocation3 + $0x1f8] sm:$0xff]
    %v103 = vld [vmem:[#allocation3 + $0x200] sm:$0xff]
    %v104 = vld [vmem:[#allocation3 + $0x208] sm:$0xff]
    %v105 = vld [vmem:[#allocation3 + $0x210] sm:$0xff]
    %v106 = vld [vmem:[#allocation3 + $0x218] sm:$0xff]
    %v107 = vld [vmem:[#allocation3 + $0x220] sm:$0xff]
    %v108 = vld [vmem:[#allocation3 + $0x228] sm:$0xff]
    %v109 = vld [vmem:[#allocation3 + $0x230] sm:$0xff]
    %v110 = vld [vmem:[#allocation3 + $0x238] sm:$0xff]
    %v111 = vld [vmem:[#allocation3 + $0x240] sm:$0xff]
    %v112 = vld [vmem:[#allocation3 + $0x248] sm:$0xff]
    %v113 = vld [vmem:[#allocation3 + $0x250] sm:$0xff]
    %v114 = vld [vmem:[#allocation3 + $0x258] sm:$0xff]
    %v115 = vld [vmem:[#allocation3 + $0x260] sm:$0xff]
    %v116 = vld [vmem:[#allocation3 + $0x268] sm:$0xff]
    %v117 = vld [vmem:[#allocation3 + $0x270] sm:$0xff]
    %v118 = vld [vmem:[#allocation3 + $0x278] sm:$0xff]
    %v119 = vld [vmem:[#allocation3 + $0x280] sm:$0xff]
    %v120 = vld [vmem:[#allocation3 + $0x288] sm:$0xff]
    %v121 = vld [vmem:[#allocation3 + $0x290] sm:$0xff]
    %v122 = vld [vmem:[#allocation3 + $0x298] sm:$0xff]
    %v123 = vld [vmem:[#allocation3 + $0x2a0] sm:$0xff]
    %v124 = vld [vmem:[#allocation3 + $0x2a8] sm:$0xff]
    %v125 = vld [vmem:[#allocation3 + $0x2b0] sm:$0xff]
    %v126 = vld [vmem:[#allocation3 + $0x2b8] sm:$0xff]
    %v127 = vld [vmem:[#allocation3 + $0x2c0] sm:$0xff]
    %v128 = vld [vmem:[#allocation3 + $0x2c8] sm:$0xff]
    %v129 = vld [vmem:[#allocation3 + $0x2d0] sm:$0xff]
    %v130 = vld [vmem:[#allocation3 + $0x2d8] sm:$0xff]
    %v131 = vld [vmem:[#allocation3 + $0x2e0] sm:$0xff]
    %v132 = vld [vmem:[#allocation3 + $0x2e8] sm:$0xff]
    %v133 = vld [vmem:[#allocation3 + $0x2f0] sm:$0xff]
    %v134 = vld [vmem:[#allocation3 + $0x2f8] sm:$0xff]
    %v135 = vld [vmem:[#allocation3 + $0x300] sm:$0xff]
    %v136 = vld [vmem:[#allocation3 + $0x308] sm:$0xff]
    %v137 = vld [vmem:[#allocation3 + $0x310] sm:$0xff]
    %v138 = vld [vmem:[#allocation3 + $0x318] sm:$0xff]
    %v139 = vld [vmem:[#allocation3 + $0x320] sm:$0xff]
    %v140 = vld [vmem:[#allocation3 + $0x328] sm:$0xff]
    %v141 = vld [vmem:[#allocation3 + $0x330] sm:$0xff]
    %v142 = vld [vmem:[#allocation3 + $0x338] sm:$0xff]
    %v143 = vld [vmem:[#allocation3 + $0x340] sm:$0xff]
    %v144 = vld [vmem:[#allocation3 + $0x348] sm:$0xff]
    %v145 = vld [vmem:[#allocation3 + $0x350] sm:$0xff]
    %v146 = vld [vmem:[#allocation3 + $0x358] sm:$0xff]
    %v147 = vld [vmem:[#allocation3 + $0x360] sm:$0xff]
    %v148 = vld [vmem:[#allocation3 + $0x368] sm:$0xff]
    %v149 = vld [vmem:[#allocation3 + $0x370] sm:$0xff]
    %v150 = vld [vmem:[#allocation3 + $0x378] sm:$0xff]
    %v151 = vld [vmem:[#allocation3 + $0x380] sm:$0xff]
    %v152 = vld [vmem:[#allocation3 + $0x388] sm:$0xff]
    %v153 = vld [vmem:[#allocation3 + $0x390] sm:$0xff]
    %v154 = vld [vmem:[#allocation3 + $0x398] sm:$0xff]
    %v155 = vld [vmem:[#allocation3 + $0x3a0] sm:$0xff]
    %v156 = vld [vmem:[#allocation3 + $0x3a8] sm:$0xff]
    %v157 = vld [vmem:[#allocation3 + $0x3b0] sm:$0xff]
    %v158 = vld [vmem:[#allocation3 + $0x3b8] sm:$0xff]
    %v159 = vld [vmem:[#allocation3 + $0x3c0] sm:$0xff]
    %v160 = vld [vmem:[#allocation3 + $0x3c8] sm:$0xff]
    %v161 = vld [vmem:[#allocation3 + $0x3d0] sm:$0xff]
    %v162 = vld [vmem:[#allocation3 + $0x3d8] sm:$0xff]
    %v163 = vld [vmem:[#allocation3 + $0x3e0] sm:$0xff]
    %v164 = vld [vmem:[#allocation3 + $0x3e8] sm:$0xff]
    %v165 = vld [vmem:[#allocation3 + $0x3f0] sm:$0xff]
    %v166 = vld [vmem:[#allocation3 + $0x3f8] sm:$0xff]
    %v167 = vld [vmem:[%s1] sm:$0xff]
    %v168 = vld [vmem:[%s2] sm:$0xff]
    %v169 = vld [vmem:[%s2 + $0x8] sm:$0xff]
    %v170 = vld [vmem:[%s2 + $0x10] sm:$0xff]
    %v171 = vld [vmem:[%s2 + $0x18] sm:$0xff]
    %v172 = vld [vmem:[%s2 + $0x20] sm:$0xff]
    %v173 = vld [vmem:[%s2 + $0x28] sm:$0xff]
    %v174 = vld [vmem:[%s2 + $0x30] sm:$0xff]
    %v175 = vld [vmem:[%s2 + $0x38] sm:$0xff]
    %v176 = vld [vmem:[%s2 + $0x40] sm:$0xff]
    %v177 = vld [vmem:[%s2 + $0x48] sm:$0xff]
    %v178 = vld [vmem:[%s2 + $0x50] sm:$0xff]
    %v179 = vld [vmem:[%s2 + $0x58] sm:$0xff]
    %v180 = vld [vmem:[%s2 + $0x60] sm:$0xff]
    %v181 = vld [vmem:[%s2 + $0x68] sm:$0xff]
    %v182 = vld [vmem:[%s2 + $0x70] sm:$0xff]
    %v183 = vld [vmem:[%s2 + $0x78] sm:$0xff]
    %v184 = vld [vmem:[%s3] sm:$0x1]
    %v186 = vlaneseq
    %v187 = vshrl.u32 %v186, 7
    %v188 = vsub.s32 0, %v187
    %v189 = vrot.slane %v184, %v188
    %191 = vmatprep.subr.mxu0 0.0
    %192 = vmatpush1.msra.mxu0 %v168
    %193 = vmatprep.subr.mxu0 0.0
    %194 = vmatpush1.msra.mxu0 %v169
    %195 = vmatprep.subr.mxu0 0.0
    %196 = vmatpush1.msra.mxu0 %v170
    %197 = vmatprep.subr.mxu0 0.0
    %198 = vmatpush1.msra.mxu0 %v171
    %199 = vmatprep.subr.mxu0 0.0
    %200 = vmatpush1.msra.mxu0 %v172
    %201 = vmatprep.subr.mxu0 0.0
    %202 = vmatpush1.msra.mxu0 %v173
    %203 = vmatprep.subr.mxu0 0.0
    %204 = vmatpush1.msra.mxu0 %v174
    %205 = vmatprep.subr.mxu0 0.0
    %206 = vmatpush1.msra.mxu0 %v175
    %207 = vmatprep.subr.mxu0 0.0
    %208 = vmatpush1.msra.mxu0 %v176
    %209 = vmatprep.subr.mxu0 0.0
    %210 = vmatpush1.msra.mxu0 %v177
    %211 = vmatprep.subr.mxu0 0.0
    %212 = vmatpush1.msra.mxu0 %v178
    %213 = vmatprep.subr.mxu0 0.0
    %214 = vmatpush1.msra.mxu0 %v179
    %215 = vmatprep.subr.mxu0 0.0
    %216 = vmatpush1.msra.mxu0 %v180
    %217 = vmatprep.subr.mxu0 0.0
    %218 = vmatpush1.msra.mxu0 %v181
    %219 = vmatprep.subr.mxu0 0.0
    %220 = vmatpush1.msra.mxu0 %v182
    %221 = vmatprep.subr.mxu0 0.0
    %222 = vmatpush1.msra.mxu0 %v183
    %223 = vmatprep.subr.mxu0 0.0
    %224 = vmatpush1.msra.mxu0 0.0
    %225 = vmatprep.subr.mxu0 0.0
    %226 = vmatpush1.msra.mxu0 0.0
    %227 = vmatprep.subr.mxu0 0.0
    %228 = vmatpush1.msra.mxu0 0.0
    %229 = vmatprep.subr.mxu0 0.0
    %230 = vmatpush1.msra.mxu0 0.0
    %231 = vmatprep.subr.mxu0 0.0
    %232 = vmatpush1.msra.mxu0 0.0
    %233 = vmatprep.subr.mxu0 0.0
    %234 = vmatpush1.msra.mxu0 0.0
    %235 = vmatprep.subr.mxu0 0.0
    %236 = vmatpush1.msra.mxu0 0.0
    %237 = vmatprep.subr.mxu0 0.0
    %238 = vmatpush1.msra.mxu0 0.0
    %239 = vmatprep.subr.mxu0 0.0
    %240 = vmatpush1.msra.mxu0 0.0
    %241 = vmatprep.subr.mxu0 0.0
    %242 = vmatpush1.msra.mxu0 0.0
    %243 = vmatprep.subr.mxu0 0.0
    %244 = vmatpush1.msra.mxu0 0.0
    %245 = vmatprep.subr.mxu0 0.0
    %246 = vmatpush1.msra.mxu0 0.0
    %247 = vmatprep.subr.mxu0 0.0
    %248 = vmatpush1.msra.mxu0 0.0
    %249 = vmatprep.subr.mxu0 0.0
    %250 = vmatpush1.msra.mxu0 0.0
    %251 = vmatprep.subr.mxu0 0.0
    %252 = vmatpush1.msra.mxu0 0.0
    %253 = vmatprep.subr.mxu0 0.0
    %254 = vmatpush1.msra.mxu0 0.0
    %255 = vmatprep.mubr.f32.mxu0 0.0
    %256 = vmatmul.mubr.f32.gmra.mrb[0].mxu0 %v39
    %v257 = vpop.f32.mrb[0].mxu0
    %v258 = vadd.f32 %v189, %v257
    %v259 = vpop.f32.mrb[0].mxu0
    %260 = vmatprep.mubr.f32.mxu0 0.0
    %261 = vmatmul.mubr.f32.gmra.mrb[0].mxu0 %v40
    %v262 = vpop.f32.mrb[0].mxu0
    %v263 = vadd.f32 %v189, %v262
    %v264 = vpop.f32.mrb[0].mxu0
    %265 = vmatprep.mubr.f32.mxu0 0.0
    %266 = vmatmul.mubr.f32.gmra.mrb[0].mxu0 %v41
    %v267 = vpop.f32.mrb[0].mxu0
    %v268 = vadd.f32 %v189, %v267
    %v269 = vpop.f32.mrb[0].mxu0
    %270 = vmatprep.mubr.f32.mxu0 0.0
    %271 = vmatmul.mubr.f32.gmra.mrb[0].mxu0 %v42
    %v272 = vpop.f32.mrb[0].mxu0
    %v273 = vadd.f32 %v189, %v272
    %v274 = vpop.f32.mrb[0].mxu0
    %275 = vmatprep.mubr.f32.mxu0 0.0
    %276 = vmatmul.mubr.f32.gmra.mrb[0].mxu0 %v43
    %v277 = vpop.f32.mrb[0].mxu0
    %v278 = vadd.f32 %v189, %v277
    %v279 = vpop.f32.mrb[0].mxu0
    %280 = vmatprep.mubr.f32.mxu0 0.0
    %281 = vmatmul.mubr.f32.gmra.mrb[0].mxu0 %v44
    %v282 = vpop.f32.mrb[0].mxu0
    %v283 = vadd.f32 %v189, %v282
    %v284 = vpop.f32.mrb[0].mxu0
    %285 = vmatprep.mubr.f32.mxu0 0.0
    %286 = vmatmul.mubr.f32.gmra.mrb[0].mxu0 %v45
    %v287 = vpop.f32.mrb[0].mxu0
    %v288 = vadd.f32 %v189, %v287
    %v289 = vpop.f32.mrb[0].mxu0
    %290 = vmatprep.mubr.f32.mxu0 0.0
    %291 = vmatmul.mubr.f32.gmra.mrb[0].mxu0 %v46
    %v292 = vpop.f32.mrb[0].mxu0
    %v293 = vadd.f32 %v189, %v292
    %v294 = vpop.f32.mrb[0].mxu0
    %295 = vmatprep.mubr.f32.mxu0 0.0
    %296 = vmatmul.mubr.f32.gmra.mrb[0].mxu0 %v47
    %v297 = vpop.f32.mrb[0].mxu0
    %v298 = vadd.f32 %v189, %v297
    %v299 = vpop.f32.mrb[0].mxu0
    %300 = vmatprep.mubr.f32.mxu0 0.0
    %301 = vmatmul.mubr.f32.gmra.mrb[0].mxu0 %v48
    %v302 = vpop.f32.mrb[0].mxu0
    %v303 = vadd.f32 %v189, %v302
    %v304 = vpop.f32.mrb[0].mxu0
    %305 = vmatprep.mubr.f32.mxu0 0.0
    %306 = vmatmul.mubr.f32.gmra.mrb[0].mxu0 %v49
    %v307 = vpop.f32.mrb[0].mxu0
    %v308 = vadd.f32 %v189, %v307
    %v309 = vpop.f32.mrb[0].mxu0
    %310 = vmatprep.mubr.f32.mxu0 0.0
    %311 = vmatmul.mubr.f32.gmra.mrb[0].mxu0 %v50
    %v312 = vpop.f32.mrb[0].mxu0
    %v313 = vadd.f32 %v189, %v312
    %v314 = vpop.f32.mrb[0].mxu0
    %315 = vmatprep.mubr.f32.mxu0 0.0
    %316 = vmatmul.mubr.f32.gmra.mrb[0].mxu0 %v51
    %v317 = vpop.f32.mrb[0].mxu0
    %v318 = vadd.f32 %v189, %v317
    %v319 = vpop.f32.mrb[0].mxu0
    %320 = vmatprep.mubr.f32.mxu0 0.0
    %321 = vmatmul.mubr.f32.gmra.mrb[0].mxu0 %v52
    %v322 = vpop.f32.mrb[0].mxu0
    %v323 = vadd.f32 %v189, %v322
    %v324 = vpop.f32.mrb[0].mxu0
    %325 = vmatprep.mubr.f32.mxu0 0.0
    %326 = vmatmul.mubr.f32.gmra.mrb[0].mxu0 %v53
    %v327 = vpop.f32.mrb[0].mxu0
    %v328 = vadd.f32 %v189, %v327
    %v329 = vpop.f32.mrb[0].mxu0
    %330 = vmatprep.mubr.f32.mxu0 0.0
    %331 = vmatmul.mubr.f32.gmra.mrb[0].mxu0 %v54
    %v332 = vpop.f32.mrb[0].mxu0
    %v333 = vadd.f32 %v189, %v332
    %v334 = vpop.f32.mrb[0].mxu0
    %335 = vmatprep.mubr.f32.mxu0 0.0
    %336 = vmatmul.mubr.f32.gmra.mrb[0].mxu0 %v55
    %v337 = vpop.f32.mrb[0].mxu0
    %v338 = vadd.f32 %v189, %v337
    %v339 = vpop.f32.mrb[0].mxu0
    %340 = vmatprep.mubr.f32.mxu0 0.0
    %341 = vmatmul.mubr.f32.gmra.mrb[0].mxu0 %v56
    %v342 = vpop.f32.mrb[0].mxu0
    %v343 = vadd.f32 %v189, %v342
    %v344 = vpop.f32.mrb[0].mxu0
    %345 = vmatprep.mubr.f32.mxu0 0.0
    %346 = vmatmul.mubr.f32.gmra.mrb[0].mxu0 %v57
    %v347 = vpop.f32.mrb[0].mxu0
    %v348 = vadd.f32 %v189, %v347
    %v349 = vpop.f32.mrb[0].mxu0
    %350 = vmatprep.mubr.f32.mxu0 0.0
    %351 = vmatmul.mubr.f32.gmra.mrb[0].mxu0 %v58
    %v352 = vpop.f32.mrb[0].mxu0
    %v353 = vadd.f32 %v189, %v352
    %v354 = vpop.f32.mrb[0].mxu0
    %355 = vmatprep.mubr.f32.mxu0 0.0
    %356 = vmatmul.mubr.f32.gmra.mrb[0].mxu0 %v59
    %v357 = vpop.f32.mrb[0].mxu0
    %v358 = vadd.f32 %v189, %v357
    %v359 = vpop.f32.mrb[0].mxu0
    %360 = vmatprep.mubr.f32.mxu0 0.0
    %361 = vmatmul.mubr.f32.gmra.mrb[0].mxu0 %v60
    %v362 = vpop.f32.mrb[0].mxu0
    %v363 = vadd.f32 %v189, %v362
    %v364 = vpop.f32.mrb[0].mxu0
    %365 = vmatprep.mubr.f32.mxu0 0.0
    %366 = vmatmul.mubr.f32.gmra.mrb[0].mxu0 %v61
    %v367 = vpop.f32.mrb[0].mxu0
    %v368 = vadd.f32 %v189, %v367
    %v369 = vpop.f32.mrb[0].mxu0
    %370 = vmatprep.mubr.f32.mxu0 0.0
    %371 = vmatmul.mubr.f32.gmra.mrb[0].mxu0 %v62
    %v372 = vpop.f32.mrb[0].mxu0
    %v373 = vadd.f32 %v189, %v372
    %v374 = vpop.f32.mrb[0].mxu0
    %375 = vmatprep.mubr.f32.mxu0 0.0
    %376 = vmatmul.mubr.f32.gmra.mrb[0].mxu0 %v63
    %v377 = vpop.f32.mrb[0].mxu0
    %v378 = vadd.f32 %v189, %v377
    %v379 = vpop.f32.mrb[0].mxu0
    %380 = vmatprep.mubr.f32.mxu0 0.0
    %381 = vmatmul.mubr.f32.gmra.mrb[0].mxu0 %v64
    %v382 = vpop.f32.mrb[0].mxu0
    %v383 = vadd.f32 %v189, %v382
    %v384 = vpop.f32.mrb[0].mxu0
    %385 = vmatprep.mubr.f32.mxu0 0.0
    %386 = vmatmul.mubr.f32.gmra.mrb[0].mxu0 %v65
    %v387 = vpop.f32.mrb[0].mxu0
    %v388 = vadd.f32 %v189, %v387
    %v389 = vpop.f32.mrb[0].mxu0
    %390 = vmatprep.mubr.f32.mxu0 0.0
    %391 = vmatmul.mubr.f32.gmra.mrb[0].mxu0 %v66
    %v392 = vpop.f32.mrb[0].mxu0
    %v393 = vadd.f32 %v189, %v392
    %v394 = vpop.f32.mrb[0].mxu0
    %395 = vmatprep.mubr.f32.mxu0 0.0
    %396 = vmatmul.mubr.f32.gmra.mrb[0].mxu0 %v67
    %v397 = vpop.f32.mrb[0].mxu0
    %v398 = vadd.f32 %v189, %v397
    %v399 = vpop.f32.mrb[0].mxu0
    %400 = vmatprep.mubr.f32.mxu0 0.0
    %401 = vmatmul.mubr.f32.gmra.mrb[0].mxu0 %v68
    %v402 = vpop.f32.mrb[0].mxu0
    %v403 = vadd.f32 %v189, %v402
    %v404 = vpop.f32.mrb[0].mxu0
    %405 = vmatprep.mubr.f32.mxu0 0.0
    %406 = vmatmul.mubr.f32.gmra.mrb[0].mxu0 %v69
    %v407 = vpop.f32.mrb[0].mxu0
    %v408 = vadd.f32 %v189, %v407
    %v409 = vpop.f32.mrb[0].mxu0
    %410 = vmatprep.mubr.f32.mxu0 0.0
    %411 = vmatmul.mubr.f32.gmra.mrb[0].mxu0 %v70
    %v412 = vpop.f32.mrb[0].mxu0
    %v413 = vadd.f32 %v189, %v412
    %v414 = vpop.f32.mrb[0].mxu0
    %415 = vmatprep.mubr.f32.mxu0 0.0
    %416 = vmatmul.mubr.f32.gmra.mrb[0].mxu0 %v71
    %v417 = vpop.f32.mrb[0].mxu0
    %v418 = vadd.f32 %v189, %v417
    %v419 = vpop.f32.mrb[0].mxu0
    %420 = vmatprep.mubr.f32.mxu0 0.0
    %421 = vmatmul.mubr.f32.gmra.mrb[0].mxu0 %v72
    %v422 = vpop.f32.mrb[0].mxu0
    %v423 = vadd.f32 %v189, %v422
    %v424 = vpop.f32.mrb[0].mxu0
    %425 = vmatprep.mubr.f32.mxu0 0.0
    %426 = vmatmul.mubr.f32.gmra.mrb[0].mxu0 %v73
    %v427 = vpop.f32.mrb[0].mxu0
    %v428 = vadd.f32 %v189, %v427
    %v429 = vpop.f32.mrb[0].mxu0
    %430 = vmatprep.mubr.f32.mxu0 0.0
    %431 = vmatmul.mubr.f32.gmra.mrb[0].mxu0 %v74
    %v432 = vpop.f32.mrb[0].mxu0
    %v433 = vadd.f32 %v189, %v432
    %v434 = vpop.f32.mrb[0].mxu0
    %435 = vmatprep.mubr.f32.mxu0 0.0
    %436 = vmatmul.mubr.f32.gmra.mrb[0].mxu0 %v75
    %v437 = vpop.f32.mrb[0].mxu0
    %v438 = vadd.f32 %v189, %v437
    %v439 = vpop.f32.mrb[0].mxu0
    %440 = vmatprep.mubr.f32.mxu0 0.0
    %441 = vmatmul.mubr.f32.gmra.mrb[0].mxu0 %v76
    %v442 = vpop.f32.mrb[0].mxu0
    %v443 = vadd.f32 %v189, %v442
    %v444 = vpop.f32.mrb[0].mxu0
    %445 = vmatprep.mubr.f32.mxu0 0.0
    %446 = vmatmul.mubr.f32.gmra.mrb[0].mxu0 %v77
    %v447 = vpop.f32.mrb[0].mxu0
    %v448 = vadd.f32 %v189, %v447
    %v449 = vpop.f32.mrb[0].mxu0
    %450 = vmatprep.mubr.f32.mxu0 0.0
    %451 = vmatmul.mubr.f32.gmra.mrb[0].mxu0 %v78
    %v452 = vpop.f32.mrb[0].mxu0
    %v453 = vadd.f32 %v189, %v452
    %v454 = vpop.f32.mrb[0].mxu0
    %455 = vmatprep.mubr.f32.mxu0 0.0
    %456 = vmatmul.mubr.f32.gmra.mrb[0].mxu0 %v79
    %v457 = vpop.f32.mrb[0].mxu0
    %v458 = vadd.f32 %v189, %v457
    %v459 = vpop.f32.mrb[0].mxu0
    %460 = vmatprep.mubr.f32.mxu0 0.0
    %461 = vmatmul.mubr.f32.gmra.mrb[0].mxu0 %v80
    %v462 = vpop.f32.mrb[0].mxu0
    %v463 = vadd.f32 %v189, %v462
    %v464 = vpop.f32.mrb[0].mxu0
    %465 = vmatprep.mubr.f32.mxu0 0.0
    %466 = vmatmul.mubr.f32.gmra.mrb[0].mxu0 %v81
    %v467 = vpop.f32.mrb[0].mxu0
    %v468 = vadd.f32 %v189, %v467
    %v469 = vpop.f32.mrb[0].mxu0
    %470 = vmatprep.mubr.f32.mxu0 0.0
    %471 = vmatmul.mubr.f32.gmra.mrb[0].mxu0 %v82
    %v472 = vpop.f32.mrb[0].mxu0
    %v473 = vadd.f32 %v189, %v472
    %v474 = vpop.f32.mrb[0].mxu0
    %475 = vmatprep.mubr.f32.mxu0 0.0
    %476 = vmatmul.mubr.f32.gmra.mrb[0].mxu0 %v83
    %v477 = vpop.f32.mrb[0].mxu0
    %v478 = vadd.f32 %v189, %v477
    %v479 = vpop.f32.mrb[0].mxu0
    %480 = vmatprep.mubr.f32.mxu0 0.0
    %481 = vmatmul.mubr.f32.gmra.mrb[0].mxu0 %v84
    %v482 = vpop.f32.mrb[0].mxu0
    %v483 = vadd.f32 %v189, %v482
    %v484 = vpop.f32.mrb[0].mxu0
    %485 = vmatprep.mubr.f32.mxu0 0.0
    %486 = vmatmul.mubr.f32.gmra.mrb[0].mxu0 %v85
    %v487 = vpop.f32.mrb[0].mxu0
    %v488 = vadd.f32 %v189, %v487
    %v489 = vpop.f32.mrb[0].mxu0
    %490 = vmatprep.mubr.f32.mxu0 0.0
    %491 = vmatmul.mubr.f32.gmra.mrb[0].mxu0 %v86
    %v492 = vpop.f32.mrb[0].mxu0
    %v493 = vadd.f32 %v189, %v492
    %v494 = vpop.f32.mrb[0].mxu0
    %495 = vmatprep.mubr.f32.mxu0 0.0
    %496 = vmatmul.mubr.f32.gmra.mrb[0].mxu0 %v87
    %v497 = vpop.f32.mrb[0].mxu0
    %v498 = vadd.f32 %v189, %v497
    %v499 = vpop.f32.mrb[0].mxu0
    %500 = vmatprep.mubr.f32.mxu0 0.0
    %501 = vmatmul.mubr.f32.gmra.mrb[0].mxu0 %v88
    %v502 = vpop.f32.mrb[0].mxu0
    %v503 = vadd.f32 %v189, %v502
    %v504 = vpop.f32.mrb[0].mxu0
    %505 = vmatprep.mubr.f32.mxu0 0.0
    %506 = vmatmul.mubr.f32.gmra.mrb[0].mxu0 %v89
    %v507 = vpop.f32.mrb[0].mxu0
    %v508 = vadd.f32 %v189, %v507
    %v509 = vpop.f32.mrb[0].mxu0
    %510 = vmatprep.mubr.f32.mxu0 0.0
    %511 = vmatmul.mubr.f32.gmra.mrb[0].mxu0 %v90
    %v512 = vpop.f32.mrb[0].mxu0
    %v513 = vadd.f32 %v189, %v512
    %v514 = vpop.f32.mrb[0].mxu0
    %515 = vmatprep.mubr.f32.mxu0 0.0
    %516 = vmatmul.mubr.f32.gmra.mrb[0].mxu0 %v91
    %v517 = vpop.f32.mrb[0].mxu0
    %v518 = vadd.f32 %v189, %v517
    %v519 = vpop.f32.mrb[0].mxu0
    %520 = vmatprep.mubr.f32.mxu0 0.0
    %521 = vmatmul.mubr.f32.gmra.mrb[0].mxu0 %v92
    %v522 = vpop.f32.mrb[0].mxu0
    %v523 = vadd.f32 %v189, %v522
    %v524 = vpop.f32.mrb[0].mxu0
    %525 = vmatprep.mubr.f32.mxu0 0.0
    %526 = vmatmul.mubr.f32.gmra.mrb[0].mxu0 %v93
    %v527 = vpop.f32.mrb[0].mxu0
    %v528 = vadd.f32 %v189, %v527
    %v529 = vpop.f32.mrb[0].mxu0
    %530 = vmatprep.mubr.f32.mxu0 0.0
    %531 = vmatmul.mubr.f32.gmra.mrb[0].mxu0 %v94
    %v532 = vpop.f32.mrb[0].mxu0
    %v533 = vadd.f32 %v189, %v532
    %v534 = vpop.f32.mrb[0].mxu0
    %535 = vmatprep.mubr.f32.mxu0 0.0
    %536 = vmatmul.mubr.f32.gmra.mrb[0].mxu0 %v95
    %v537 = vpop.f32.mrb[0].mxu0
    %v538 = vadd.f32 %v189, %v537
    %v539 = vpop.f32.mrb[0].mxu0
    %540 = vmatprep.mubr.f32.mxu0 0.0
    %541 = vmatmul.mubr.f32.gmra.mrb[0].mxu0 %v96
    %v542 = vpop.f32.mrb[0].mxu0
    %v543 = vadd.f32 %v189, %v542
    %v544 = vpop.f32.mrb[0].mxu0
    %545 = vmatprep.mubr.f32.mxu0 0.0
    %546 = vmatmul.mubr.f32.gmra.mrb[0].mxu0 %v97
    %v547 = vpop.f32.mrb[0].mxu0
    %v548 = vadd.f32 %v189, %v547
    %v549 = vpop.f32.mrb[0].mxu0
    %550 = vmatprep.mubr.f32.mxu0 0.0
    %551 = vmatmul.mubr.f32.gmra.mrb[0].mxu0 %v98
    %v552 = vpop.f32.mrb[0].mxu0
    %v553 = vadd.f32 %v189, %v552
    %v554 = vpop.f32.mrb[0].mxu0
    %555 = vmatprep.mubr.f32.mxu0 0.0
    %556 = vmatmul.mubr.f32.gmra.mrb[0].mxu0 %v99
    %v557 = vpop.f32.mrb[0].mxu0
    %v558 = vadd.f32 %v189, %v557
    %v559 = vpop.f32.mrb[0].mxu0
    %560 = vmatprep.mubr.f32.mxu0 0.0
    %561 = vmatmul.mubr.f32.gmra.mrb[0].mxu0 %v100
    %v562 = vpop.f32.mrb[0].mxu0
    %v563 = vadd.f32 %v189, %v562
    %v564 = vpop.f32.mrb[0].mxu0
    %565 = vmatprep.mubr.f32.mxu0 0.0
    %566 = vmatmul.mubr.f32.gmra.mrb[0].mxu0 %v101
    %v567 = vpop.f32.mrb[0].mxu0
    %v568 = vadd.f32 %v189, %v567
    %v569 = vpop.f32.mrb[0].mxu0
    %570 = vmatprep.mubr.f32.mxu0 0.0
    %571 = vmatmul.mubr.f32.gmra.mrb[0].mxu0 %v102
    %v572 = vpop.f32.mrb[0].mxu0
    %v573 = vadd.f32 %v189, %v572
    %v574 = vpop.f32.mrb[0].mxu0
    %575 = vmatprep.mubr.f32.mxu0 0.0
    %576 = vmatmul.mubr.f32.gmra.mrb[0].mxu0 %v103
    %v577 = vpop.f32.mrb[0].mxu0
    %v578 = vadd.f32 %v189, %v577
    %v579 = vpop.f32.mrb[0].mxu0
    %580 = vmatprep.mubr.f32.mxu0 0.0
    %581 = vmatmul.mubr.f32.gmra.mrb[0].mxu0 %v104
    %v582 = vpop.f32.mrb[0].mxu0
    %v583 = vadd.f32 %v189, %v582
    %v584 = vpop.f32.mrb[0].mxu0
    %585 = vmatprep.mubr.f32.mxu0 0.0
    %586 = vmatmul.mubr.f32.gmra.mrb[0].mxu0 %v105
    %v587 = vpop.f32.mrb[0].mxu0
    %v588 = vadd.f32 %v189, %v587
    %v589 = vpop.f32.mrb[0].mxu0
    %590 = vmatprep.mubr.f32.mxu0 0.0
    %591 = vmatmul.mubr.f32.gmra.mrb[0].mxu0 %v106
    %v592 = vpop.f32.mrb[0].mxu0
    %v593 = vadd.f32 %v189, %v592
    %v594 = vpop.f32.mrb[0].mxu0
    %595 = vmatprep.mubr.f32.mxu0 0.0
    %596 = vmatmul.mubr.f32.gmra.mrb[0].mxu0 %v107
    %v597 = vpop.f32.mrb[0].mxu0
    %v598 = vadd.f32 %v189, %v597
    %v599 = vpop.f32.mrb[0].mxu0
    %600 = vmatprep.mubr.f32.mxu0 0.0
    %601 = vmatmul.mubr.f32.gmra.mrb[0].mxu0 %v108
    %v602 = vpop.f32.mrb[0].mxu0
    %v603 = vadd.f32 %v189, %v602
    %v604 = vpop.f32.mrb[0].mxu0
    %605 = vmatprep.mubr.f32.mxu0 0.0
    %606 = vmatmul.mubr.f32.gmra.mrb[0].mxu0 %v109
    %v607 = vpop.f32.mrb[0].mxu0
    %v608 = vadd.f32 %v189, %v607
    %v609 = vpop.f32.mrb[0].mxu0
    %610 = vmatprep.mubr.f32.mxu0 0.0
    %611 = vmatmul.mubr.f32.gmra.mrb[0].mxu0 %v110
    %v612 = vpop.f32.mrb[0].mxu0
    %v613 = vadd.f32 %v189, %v612
    %v614 = vpop.f32.mrb[0].mxu0
    %615 = vmatprep.mubr.f32.mxu0 0.0
    %616 = vmatmul.mubr.f32.gmra.mrb[0].mxu0 %v111
    %v617 = vpop.f32.mrb[0].mxu0
    %v618 = vadd.f32 %v189, %v617
    %v619 = vpop.f32.mrb[0].mxu0
    %620 = vmatprep.mubr.f32.mxu0 0.0
    %621 = vmatmul.mubr.f32.gmra.mrb[0].mxu0 %v112
    %v622 = vpop.f32.mrb[0].mxu0
    %v623 = vadd.f32 %v189, %v622
    %v624 = vpop.f32.mrb[0].mxu0
    %625 = vmatprep.mubr.f32.mxu0 0.0
    %626 = vmatmul.mubr.f32.gmra.mrb[0].mxu0 %v113
    %v627 = vpop.f32.mrb[0].mxu0
    %v628 = vadd.f32 %v189, %v627
    %v629 = vpop.f32.mrb[0].mxu0
    %630 = vmatprep.mubr.f32.mxu0 0.0
    %631 = vmatmul.mubr.f32.gmra.mrb[0].mxu0 %v114
    %v632 = vpop.f32.mrb[0].mxu0
    %v633 = vadd.f32 %v189, %v632
    %v634 = vpop.f32.mrb[0].mxu0
    %635 = vmatprep.mubr.f32.mxu0 0.0
    %636 = vmatmul.mubr.f32.gmra.mrb[0].mxu0 %v115
    %v637 = vpop.f32.mrb[0].mxu0
    %v638 = vadd.f32 %v189, %v637
    %v639 = vpop.f32.mrb[0].mxu0
    %640 = vmatprep.mubr.f32.mxu0 0.0
    %641 = vmatmul.mubr.f32.gmra.mrb[0].mxu0 %v116
    %v642 = vpop.f32.mrb[0].mxu0
    %v643 = vadd.f32 %v189, %v642
    %v644 = vpop.f32.mrb[0].mxu0
    %645 = vmatprep.mubr.f32.mxu0 0.0
    %646 = vmatmul.mubr.f32.gmra.mrb[0].mxu0 %v117
    %v647 = vpop.f32.mrb[0].mxu0
    %v648 = vadd.f32 %v189, %v647
    %v649 = vpop.f32.mrb[0].mxu0
    %650 = vmatprep.mubr.f32.mxu0 0.0
    %651 = vmatmul.mubr.f32.gmra.mrb[0].mxu0 %v118
    %v652 = vpop.f32.mrb[0].mxu0
    %v653 = vadd.f32 %v189, %v652
    %v654 = vpop.f32.mrb[0].mxu0
    %655 = vmatprep.mubr.f32.mxu0 0.0
    %656 = vmatmul.mubr.f32.gmra.mrb[0].mxu0 %v119
    %v657 = vpop.f32.mrb[0].mxu0
    %v658 = vadd.f32 %v189, %v657
    %v659 = vpop.f32.mrb[0].mxu0
    %660 = vmatprep.mubr.f32.mxu0 0.0
    %661 = vmatmul.mubr.f32.gmra.mrb[0].mxu0 %v120
    %v662 = vpop.f32.mrb[0].mxu0
    %v663 = vadd.f32 %v189, %v662
    %v664 = vpop.f32.mrb[0].mxu0
    %665 = vmatprep.mubr.f32.mxu0 0.0
    %666 = vmatmul.mubr.f32.gmra.mrb[0].mxu0 %v121
    %v667 = vpop.f32.mrb[0].mxu0
    %v668 = vadd.f32 %v189, %v667
    %v669 = vpop.f32.mrb[0].mxu0
    %670 = vmatprep.mubr.f32.mxu0 0.0
    %671 = vmatmul.mubr.f32.gmra.mrb[0].mxu0 %v122
    %v672 = vpop.f32.mrb[0].mxu0
    %v673 = vadd.f32 %v189, %v672
    %v674 = vpop.f32.mrb[0].mxu0
    %675 = vmatprep.mubr.f32.mxu0 0.0
    %676 = vmatmul.mubr.f32.gmra.mrb[0].mxu0 %v123
    %v677 = vpop.f32.mrb[0].mxu0
    %v678 = vadd.f32 %v189, %v677
    %v679 = vpop.f32.mrb[0].mxu0
    %680 = vmatprep.mubr.f32.mxu0 0.0
    %681 = vmatmul.mubr.f32.gmra.mrb[0].mxu0 %v124
    %v682 = vpop.f32.mrb[0].mxu0
    %v683 = vadd.f32 %v189, %v682
    %v684 = vpop.f32.mrb[0].mxu0
    %685 = vmatprep.mubr.f32.mxu0 0.0
    %686 = vmatmul.mubr.f32.gmra.mrb[0].mxu0 %v125
    %v687 = vpop.f32.mrb[0].mxu0
    %v688 = vadd.f32 %v189, %v687
    %v689 = vpop.f32.mrb[0].mxu0
    %690 = vmatprep.mubr.f32.mxu0 0.0
    %691 = vmatmul.mubr.f32.gmra.mrb[0].mxu0 %v126
    %v692 = vpop.f32.mrb[0].mxu0
    %v693 = vadd.f32 %v189, %v692
    %v694 = vpop.f32.mrb[0].mxu0
    %695 = vmatprep.mubr.f32.mxu0 0.0
    %696 = vmatmul.mubr.f32.gmra.mrb[0].mxu0 %v127
    %v697 = vpop.f32.mrb[0].mxu0
    %v698 = vadd.f32 %v189, %v697
    %v699 = vpop.f32.mrb[0].mxu0
    %700 = vmatprep.mubr.f32.mxu0 0.0
    %701 = vmatmul.mubr.f32.gmra.mrb[0].mxu0 %v128
    %v702 = vpop.f32.mrb[0].mxu0
    %v703 = vadd.f32 %v189, %v702
    %v704 = vpop.f32.mrb[0].mxu0
    %705 = vmatprep.mubr.f32.mxu0 0.0
    %706 = vmatmul.mubr.f32.gmra.mrb[0].mxu0 %v129
    %v707 = vpop.f32.mrb[0].mxu0
    %v708 = vadd.f32 %v189, %v707
    %v709 = vpop.f32.mrb[0].mxu0
    %710 = vmatprep.mubr.f32.mxu0 0.0
    %711 = vmatmul.mubr.f32.gmra.mrb[0].mxu0 %v130
    %v712 = vpop.f32.mrb[0].mxu0
    %v713 = vadd.f32 %v189, %v712
    %v714 = vpop.f32.mrb[0].mxu0
    %715 = vmatprep.mubr.f32.mxu0 0.0
    %716 = vmatmul.mubr.f32.gmra.mrb[0].mxu0 %v131
    %v717 = vpop.f32.mrb[0].mxu0
    %v718 = vadd.f32 %v189, %v717
    %v719 = vpop.f32.mrb[0].mxu0
    %720 = vmatprep.mubr.f32.mxu0 0.0
    %721 = vmatmul.mubr.f32.gmra.mrb[0].mxu0 %v132
    %v722 = vpop.f32.mrb[0].mxu0
    %v723 = vadd.f32 %v189, %v722
    %v724 = vpop.f32.mrb[0].mxu0
    %725 = vmatprep.mubr.f32.mxu0 0.0
    %726 = vmatmul.mubr.f32.gmra.mrb[0].mxu0 %v133
    %v727 = vpop.f32.mrb[0].mxu0
    %v728 = vadd.f32 %v189, %v727
    %v729 = vpop.f32.mrb[0].mxu0
    %730 = vmatprep.mubr.f32.mxu0 0.0
    %731 = vmatmul.mubr.f32.gmra.mrb[0].mxu0 %v134
    %v732 = vpop.f32.mrb[0].mxu0
    %v733 = vadd.f32 %v189, %v732
    %v734 = vpop.f32.mrb[0].mxu0
    %735 = vmatprep.mubr.f32.mxu0 0.0
    %736 = vmatmul.mubr.f32.gmra.mrb[0].mxu0 %v135
    %v737 = vpop.f32.mrb[0].mxu0
    %v738 = vadd.f32 %v189, %v737
    %v739 = vpop.f32.mrb[0].mxu0
    %740 = vmatprep.mubr.f32.mxu0 0.0
    %741 = vmatmul.mubr.f32.gmra.mrb[0].mxu0 %v136
    %v742 = vpop.f32.mrb[0].mxu0
    %v743 = vadd.f32 %v189, %v742
    %v744 = vpop.f32.mrb[0].mxu0
    %745 = vmatprep.mubr.f32.mxu0 0.0
    %746 = vmatmul.mubr.f32.gmra.mrb[0].mxu0 %v137
    %v747 = vpop.f32.mrb[0].mxu0
    %v748 = vadd.f32 %v189, %v747
    %v749 = vpop.f32.mrb[0].mxu0
    %750 = vmatprep.mubr.f32.mxu0 0.0
    %751 = vmatmul.mubr.f32.gmra.mrb[0].mxu0 %v138
    %v752 = vpop.f32.mrb[0].mxu0
    %v753 = vadd.f32 %v189, %v752
    %v754 = vpop.f32.mrb[0].mxu0
    %755 = vmatprep.mubr.f32.mxu0 0.0
    %756 = vmatmul.mubr.f32.gmra.mrb[0].mxu0 %v139
    %v757 = vpop.f32.mrb[0].mxu0
    %v758 = vadd.f32 %v189, %v757
    %v759 = vpop.f32.mrb[0].mxu0
    %760 = vmatprep.mubr.f32.mxu0 0.0
    %761 = vmatmul.mubr.f32.gmra.mrb[0].mxu0 %v140
    %v762 = vpop.f32.mrb[0].mxu0
    %v763 = vadd.f32 %v189, %v762
    %v764 = vpop.f32.mrb[0].mxu0
    %765 = vmatprep.mubr.f32.mxu0 0.0
    %766 = vmatmul.mubr.f32.gmra.mrb[0].mxu0 %v141
    %v767 = vpop.f32.mrb[0].mxu0
    %v768 = vadd.f32 %v189, %v767
    %v769 = vpop.f32.mrb[0].mxu0
    %770 = vmatprep.mubr.f32.mxu0 0.0
    %771 = vmatmul.mubr.f32.gmra.mrb[0].mxu0 %v142
    %v772 = vpop.f32.mrb[0].mxu0
    %v773 = vadd.f32 %v189, %v772
    %v774 = vpop.f32.mrb[0].mxu0
    %775 = vmatprep.mubr.f32.mxu0 0.0
    %776 = vmatmul.mubr.f32.gmra.mrb[0].mxu0 %v143
    %v777 = vpop.f32.mrb[0].mxu0
    %v778 = vadd.f32 %v189, %v777
    %v779 = vpop.f32.mrb[0].mxu0
    %780 = vmatprep.mubr.f32.mxu0 0.0
    %781 = vmatmul.mubr.f32.gmra.mrb[0].mxu0 %v144
    %v782 = vpop.f32.mrb[0].mxu0
    %v783 = vadd.f32 %v189, %v782
    %v784 = vpop.f32.mrb[0].mxu0
    %785 = vmatprep.mubr.f32.mxu0 0.0
    %786 = vmatmul.mubr.f32.gmra.mrb[0].mxu0 %v145
    %v787 = vpop.f32.mrb[0].mxu0
    %v788 = vadd.f32 %v189, %v787
    %v789 = vpop.f32.mrb[0].mxu0
    %790 = vmatprep.mubr.f32.mxu0 0.0
    %791 = vmatmul.mubr.f32.gmra.mrb[0].mxu0 %v146
    %v792 = vpop.f32.mrb[0].mxu0
    %v793 = vadd.f32 %v189, %v792
    %v794 = vpop.f32.mrb[0].mxu0
    %795 = vmatprep.mubr.f32.mxu0 0.0
    %796 = vmatmul.mubr.f32.gmra.mrb[0].mxu0 %v147
    %v797 = vpop.f32.mrb[0].mxu0
    %v798 = vadd.f32 %v189, %v797
    %v799 = vpop.f32.mrb[0].mxu0
    %800 = vmatprep.mubr.f32.mxu0 0.0
    %801 = vmatmul.mubr.f32.gmra.mrb[0].mxu0 %v148
    %v802 = vpop.f32.mrb[0].mxu0
    %v803 = vadd.f32 %v189, %v802
    %v804 = vpop.f32.mrb[0].mxu0
    %805 = vmatprep.mubr.f32.mxu0 0.0
    %806 = vmatmul.mubr.f32.gmra.mrb[0].mxu0 %v149
    %v807 = vpop.f32.mrb[0].mxu0
    %v808 = vadd.f32 %v189, %v807
    %v809 = vpop.f32.mrb[0].mxu0
    %810 = vmatprep.mubr.f32.mxu0 0.0
    %811 = vmatmul.mubr.f32.gmra.mrb[0].mxu0 %v150
    %v812 = vpop.f32.mrb[0].mxu0
    %v813 = vadd.f32 %v189, %v812
    %v814 = vpop.f32.mrb[0].mxu0
    %815 = vmatprep.mubr.f32.mxu0 0.0
    %816 = vmatmul.mubr.f32.gmra.mrb[0].mxu0 %v151
    %v817 = vpop.f32.mrb[0].mxu0
    %v818 = vadd.f32 %v189, %v817
    %v819 = vpop.f32.mrb[0].mxu0
    %820 = vmatprep.mubr.f32.mxu0 0.0
    %821 = vmatmul.mubr.f32.gmra.mrb[0].mxu0 %v152
    %v822 = vpop.f32.mrb[0].mxu0
    %v823 = vadd.f32 %v189, %v822
    %v824 = vpop.f32.mrb[0].mxu0
    %825 = vmatprep.mubr.f32.mxu0 0.0
    %826 = vmatmul.mubr.f32.gmra.mrb[0].mxu0 %v153
    %v827 = vpop.f32.mrb[0].mxu0
    %v828 = vadd.f32 %v189, %v827
    %v829 = vpop.f32.mrb[0].mxu0
    %830 = vmatprep.mubr.f32.mxu0 0.0
    %831 = vmatmul.mubr.f32.gmra.mrb[0].mxu0 %v154
    %v832 = vpop.f32.mrb[0].mxu0
    %v833 = vadd.f32 %v189, %v832
    %v834 = vpop.f32.mrb[0].mxu0
    %835 = vmatprep.mubr.f32.mxu0 0.0
    %836 = vmatmul.mubr.f32.gmra.mrb[0].mxu0 %v155
    %v837 = vpop.f32.mrb[0].mxu0
    %v838 = vadd.f32 %v189, %v837
    %v839 = vpop.f32.mrb[0].mxu0
    %840 = vmatprep.mubr.f32.mxu0 0.0
    %841 = vmatmul.mubr.f32.gmra.mrb[0].mxu0 %v156
    %v842 = vpop.f32.mrb[0].mxu0
    %v843 = vadd.f32 %v189, %v842
    %v844 = vpop.f32.mrb[0].mxu0
    %845 = vmatprep.mubr.f32.mxu0 0.0
    %846 = vmatmul.mubr.f32.gmra.mrb[0].mxu0 %v157
    %v847 = vpop.f32.mrb[0].mxu0
    %v848 = vadd.f32 %v189, %v847
    %v849 = vpop.f32.mrb[0].mxu0
    %850 = vmatprep.mubr.f32.mxu0 0.0
    %851 = vmatmul.mubr.f32.gmra.mrb[0].mxu0 %v158
    %v852 = vpop.f32.mrb[0].mxu0
    %v853 = vadd.f32 %v189, %v852
    %v854 = vpop.f32.mrb[0].mxu0
    %855 = vmatprep.mubr.f32.mxu0 0.0
    %856 = vmatmul.mubr.f32.gmra.mrb[0].mxu0 %v159
    %v857 = vpop.f32.mrb[0].mxu0
    %v858 = vadd.f32 %v189, %v857
    %v859 = vpop.f32.mrb[0].mxu0
    %860 = vmatprep.mubr.f32.mxu0 0.0
    %861 = vmatmul.mubr.f32.gmra.mrb[0].mxu0 %v160
    %v862 = vpop.f32.mrb[0].mxu0
    %v863 = vadd.f32 %v189, %v862
    %v864 = vpop.f32.mrb[0].mxu0
    %865 = vmatprep.mubr.f32.mxu0 0.0
    %866 = vmatmul.mubr.f32.gmra.mrb[0].mxu0 %v161
    %v867 = vpop.f32.mrb[0].mxu0
    %v868 = vadd.f32 %v189, %v867
    %v869 = vpop.f32.mrb[0].mxu0
    %870 = vmatprep.mubr.f32.mxu0 0.0
    %871 = vmatmul.mubr.f32.gmra.mrb[0].mxu0 %v162
    %v872 = vpop.f32.mrb[0].mxu0
    %v873 = vadd.f32 %v189, %v872
    %v874 = vpop.f32.mrb[0].mxu0
    %875 = vmatprep.mubr.f32.mxu0 0.0
    %876 = vmatmul.mubr.f32.gmra.mrb[0].mxu0 %v163
    %v877 = vpop.f32.mrb[0].mxu0
    %v878 = vadd.f32 %v189, %v877
    %v879 = vpop.f32.mrb[0].mxu0
    %880 = vmatprep.mubr.f32.mxu0 0.0
    %881 = vmatmul.mubr.f32.gmra.mrb[0].mxu0 %v164
    %v882 = vpop.f32.mrb[0].mxu0
    %v883 = vadd.f32 %v189, %v882
    %v884 = vpop.f32.mrb[0].mxu0
    %885 = vmatprep.mubr.f32.mxu0 0.0
    %886 = vmatmul.mubr.f32.gmra.mrb[0].mxu0 %v165
    %v887 = vpop.f32.mrb[0].mxu0
    %v888 = vadd.f32 %v189, %v887
    %v889 = vpop.f32.mrb[0].mxu0
    %890 = vmatprep.mubr.f32.mxu0 0.0
    %891 = vmatmul.mubr.f32.gmra.mrb[0].mxu0 %v166
    %v892 = vpop.f32.mrb[0].mxu0
    %v893 = vadd.f32 %v189, %v892
    %v894 = vpop.f32.mrb[0].mxu0
    %895 = vdwg.mxu0
    %v896 = vmax.f32 %v258, 0.0
    %v897 = vmax.f32 %v263, 0.0
    %v898 = vmax.f32 %v268, 0.0
    %v899 = vmax.f32 %v273, 0.0
    %v900 = vmax.f32 %v278, 0.0
    %v901 = vmax.f32 %v283, 0.0
    %v902 = vmax.f32 %v288, 0.0
    %v903 = vmax.f32 %v293, 0.0
    %v904 = vmax.f32 %v298, 0.0
    %v905 = vmax.f32 %v303, 0.0
    %v906 = vmax.f32 %v308, 0.0
    %v907 = vmax.f32 %v313, 0.0
    %v908 = vmax.f32 %v318, 0.0
    %v909 = vmax.f32 %v323, 0.0
    %v910 = vmax.f32 %v328, 0.0
    %v911 = vmax.f32 %v333, 0.0
    %v912 = vmax.f32 %v338, 0.0
    %v913 = vmax.f32 %v343, 0.0
    %v914 = vmax.f32 %v348, 0.0
    %v915 = vmax.f32 %v353, 0.0
    %v916 = vmax.f32 %v358, 0.0
    %v917 = vmax.f32 %v363, 0.0
    %v918 = vmax.f32 %v368, 0.0
    %v919 = vmax.f32 %v373, 0.0
    %v920 = vmax.f32 %v378, 0.0
    %v921 = vmax.f32 %v383, 0.0
    %v922 = vmax.f32 %v388, 0.0
    %v923 = vmax.f32 %v393, 0.0
    %v924 = vmax.f32 %v398, 0.0
    %v925 = vmax.f32 %v403, 0.0
    %v926 = vmax.f32 %v408, 0.0
    %v927 = vmax.f32 %v413, 0.0
    %v928 = vmax.f32 %v418, 0.0
    %v929 = vmax.f32 %v423, 0.0
    %v930 = vmax.f32 %v428, 0.0
    %v931 = vmax.f32 %v433, 0.0
    %v932 = vmax.f32 %v438, 0.0
    %v933 = vmax.f32 %v443, 0.0
    %v934 = vmax.f32 %v448, 0.0
    %v935 = vmax.f32 %v453, 0.0
    %v936 = vmax.f32 %v458, 0.0
    %v937 = vmax.f32 %v463, 0.0
    %v938 = vmax.f32 %v468, 0.0
    %v939 = vmax.f32 %v473, 0.0
    %v940 = vmax.f32 %v478, 0.0
    %v941 = vmax.f32 %v483, 0.0
    %v942 = vmax.f32 %v488, 0.0
    %v943 = vmax.f32 %v493, 0.0
    %v944 = vmax.f32 %v498, 0.0
    %v945 = vmax.f32 %v503, 0.0
    %v946 = vmax.f32 %v508, 0.0
    %v947 = vmax.f32 %v513, 0.0
    %v948 = vmax.f32 %v518, 0.0
    %v949 = vmax.f32 %v523, 0.0
    %v950 = vmax.f32 %v528, 0.0
    %v951 = vmax.f32 %v533, 0.0
    %v952 = vmax.f32 %v538, 0.0
    %v953 = vmax.f32 %v543, 0.0
    %v954 = vmax.f32 %v548, 0.0
    %v955 = vmax.f32 %v553, 0.0
    %v956 = vmax.f32 %v558, 0.0
    %v957 = vmax.f32 %v563, 0.0
    %v958 = vmax.f32 %v568, 0.0
    %v959 = vmax.f32 %v573, 0.0
    %v960 = vmax.f32 %v578, 0.0
    %v961 = vmax.f32 %v583, 0.0
    %v962 = vmax.f32 %v588, 0.0
    %v963 = vmax.f32 %v593, 0.0
    %v964 = vmax.f32 %v598, 0.0
    %v965 = vmax.f32 %v603, 0.0
    %v966 = vmax.f32 %v608, 0.0
    %v967 = vmax.f32 %v613, 0.0
    %v968 = vmax.f32 %v618, 0.0
    %v969 = vmax.f32 %v623, 0.0
    %v970 = vmax.f32 %v628, 0.0
    %v971 = vmax.f32 %v633, 0.0
    %v972 = vmax.f32 %v638, 0.0
    %v973 = vmax.f32 %v643, 0.0
    %v974 = vmax.f32 %v648, 0.0
    %v975 = vmax.f32 %v653, 0.0
    %v976 = vmax.f32 %v658, 0.0
    %v977 = vmax.f32 %v663, 0.0
    %v978 = vmax.f32 %v668, 0.0
    %v979 = vmax.f32 %v673, 0.0
    %v980 = vmax.f32 %v678, 0.0
    %v981 = vmax.f32 %v683, 0.0
    %v982 = vmax.f32 %v688, 0.0
    %v983 = vmax.f32 %v693, 0.0
    %v984 = vmax.f32 %v698, 0.0
    %v985 = vmax.f32 %v703, 0.0
    %v986 = vmax.f32 %v708, 0.0
    %v987 = vmax.f32 %v713, 0.0
    %v988 = vmax.f32 %v718, 0.0
    %v989 = vmax.f32 %v723, 0.0
    %v990 = vmax.f32 %v728, 0.0
    %v991 = vmax.f32 %v733, 0.0
    %v992 = vmax.f32 %v738, 0.0
    %v993 = vmax.f32 %v743, 0.0
    %v994 = vmax.f32 %v748, 0.0
    %v995 = vmax.f32 %v753, 0.0
    %v996 = vmax.f32 %v758, 0.0
    %v997 = vmax.f32 %v763, 0.0
    %v998 = vmax.f32 %v768, 0.0
    %v999 = vmax.f32 %v773, 0.0
    %v1000 = vmax.f32 %v778, 0.0
    %v1001 = vmax.f32 %v783, 0.0
    %v1002 = vmax.f32 %v788, 0.0
    %v1003 = vmax.f32 %v793, 0.0
    %v1004 = vmax.f32 %v798, 0.0
    %v1005 = vmax.f32 %v803, 0.0
    %v1006 = vmax.f32 %v808, 0.0
    %v1007 = vmax.f32 %v813, 0.0
    %v1008 = vmax.f32 %v818, 0.0
    %v1009 = vmax.f32 %v823, 0.0
    %v1010 = vmax.f32 %v828, 0.0
    %v1011 = vmax.f32 %v833, 0.0
    %v1012 = vmax.f32 %v838, 0.0
    %v1013 = vmax.f32 %v843, 0.0
    %v1014 = vmax.f32 %v848, 0.0
    %v1015 = vmax.f32 %v853, 0.0
    %v1016 = vmax.f32 %v858, 0.0
    %v1017 = vmax.f32 %v863, 0.0
    %v1018 = vmax.f32 %v868, 0.0
    %v1019 = vmax.f32 %v873, 0.0
    %v1020 = vmax.f32 %v878, 0.0
    %v1021 = vmax.f32 %v883, 0.0
    %v1022 = vmax.f32 %v888, 0.0
    %v1023 = vmax.f32 %v893, 0.0
    %v1024 = vld [vmem:[%s4] sm:$0x1]
    %vm1025 = vcmask 261120
    %v1027 = vsel %vm1025, %v1024, 0
    %v1030 = vsel %vm1025, %v896, 0
    %v1033 = vsel %vm1025, %v897, 0
    %v1036 = vsel %vm1025, %v898, 0
    %v1039 = vsel %vm1025, %v899, 0
    %v1042 = vsel %vm1025, %v900, 0
    %v1045 = vsel %vm1025, %v901, 0
    %v1048 = vsel %vm1025, %v902, 0
    %v1051 = vsel %vm1025, %v903, 0
    %v1054 = vsel %vm1025, %v904, 0
    %v1057 = vsel %vm1025, %v905, 0
    %v1060 = vsel %vm1025, %v906, 0
    %v1063 = vsel %vm1025, %v907, 0
    %v1066 = vsel %vm1025, %v908, 0
    %v1069 = vsel %vm1025, %v909, 0
    %v1072 = vsel %vm1025, %v910, 0
    %v1075 = vsel %vm1025, %v911, 0
    %v1078 = vsel %vm1025, %v912, 0
    %v1081 = vsel %vm1025, %v913, 0
    %v1084 = vsel %vm1025, %v914, 0
    %v1087 = vsel %vm1025, %v915, 0
    %v1090 = vsel %vm1025, %v916, 0
    %v1093 = vsel %vm1025, %v917, 0
    %v1096 = vsel %vm1025, %v918, 0
    %v1099 = vsel %vm1025, %v919, 0
    %v1102 = vsel %vm1025, %v920, 0
    %v1105 = vsel %vm1025, %v921, 0
    %v1108 = vsel %vm1025, %v922, 0
    %v1111 = vsel %vm1025, %v923, 0
    %v1114 = vsel %vm1025, %v924, 0
    %v1117 = vsel %vm1025, %v925, 0
    %v1120 = vsel %vm1025, %v926, 0
    %v1123 = vsel %vm1025, %v927, 0
    %v1126 = vsel %vm1025, %v928, 0
    %v1129 = vsel %vm1025, %v929, 0
    %v1132 = vsel %vm1025, %v930, 0
    %v1135 = vsel %vm1025, %v931, 0
    %v1138 = vsel %vm1025, %v932, 0
    %v1141 = vsel %vm1025, %v933, 0
    %v1144 = vsel %vm1025, %v934, 0
    %v1147 = vsel %vm1025, %v935, 0
    %v1150 = vsel %vm1025, %v936, 0
    %v1153 = vsel %vm1025, %v937, 0
    %v1156 = vsel %vm1025, %v938, 0
    %v1159 = vsel %vm1025, %v939, 0
    %v1162 = vsel %vm1025, %v940, 0
    %v1165 = vsel %vm1025, %v941, 0
    %v1168 = vsel %vm1025, %v942, 0
    %v1171 = vsel %vm1025, %v943, 0
    %v1174 = vsel %vm1025, %v944, 0
    %v1177 = vsel %vm1025, %v945, 0
    %v1180 = vsel %vm1025, %v946, 0
    %v1183 = vsel %vm1025, %v947, 0
    %v1186 = vsel %vm1025, %v948, 0
    %v1189 = vsel %vm1025, %v949, 0
    %v1192 = vsel %vm1025, %v950, 0
    %v1195 = vsel %vm1025, %v951, 0
    %v1198 = vsel %vm1025, %v952, 0
    %v1201 = vsel %vm1025, %v953, 0
    %v1204 = vsel %vm1025, %v954, 0
    %v1207 = vsel %vm1025, %v955, 0
    %v1210 = vsel %vm1025, %v956, 0
    %v1213 = vsel %vm1025, %v957, 0
    %v1216 = vsel %vm1025, %v958, 0
    %v1219 = vsel %vm1025, %v959, 0
    %v1222 = vsel %vm1025, %v960, 0
    %v1225 = vsel %vm1025, %v961, 0
    %v1228 = vsel %vm1025, %v962, 0
    %v1231 = vsel %vm1025, %v963, 0
    %v1234 = vsel %vm1025, %v964, 0
    %v1237 = vsel %vm1025, %v965, 0
    %v1240 = vsel %vm1025, %v966, 0
    %v1243 = vsel %vm1025, %v967, 0
    %v1246 = vsel %vm1025, %v968, 0
    %v1249 = vsel %vm1025, %v969, 0
    %v1252 = vsel %vm1025, %v970, 0
    %v1255 = vsel %vm1025, %v971, 0
    %v1258 = vsel %vm1025, %v972, 0
    %v1261 = vsel %vm1025, %v973, 0
    %v1264 = vsel %vm1025, %v974, 0
    %v1267 = vsel %vm1025, %v975, 0
    %v1270 = vsel %vm1025, %v976, 0
    %v1273 = vsel %vm1025, %v977, 0
    %v1276 = vsel %vm1025, %v978, 0
    %v1279 = vsel %vm1025, %v979, 0
    %v1282 = vsel %vm1025, %v980, 0
    %v1285 = vsel %vm1025, %v981, 0
    %v1288 = vsel %vm1025, %v982, 0
    %v1291 = vsel %vm1025, %v983, 0
    %v1294 = vsel %vm1025, %v984, 0
    %v1297 = vsel %vm1025, %v985, 0
    %v1300 = vsel %vm1025, %v986, 0
    %v1303 = vsel %vm1025, %v987, 0
    %v1306 = vsel %vm1025, %v988, 0
    %v1309 = vsel %vm1025, %v989, 0
    %v1312 = vsel %vm1025, %v990, 0
    %v1315 = vsel %vm1025, %v991, 0
    %v1318 = vsel %vm1025, %v992, 0
    %v1321 = vsel %vm1025, %v993, 0
    %v1324 = vsel %vm1025, %v994, 0
    %v1327 = vsel %vm1025, %v995, 0
    %v1330 = vsel %vm1025, %v996, 0
    %v1333 = vsel %vm1025, %v997, 0
    %v1336 = vsel %vm1025, %v998, 0
    %v1339 = vsel %vm1025, %v999, 0
    %v1342 = vsel %vm1025, %v1000, 0
    %v1345 = vsel %vm1025, %v1001, 0
    %v1348 = vsel %vm1025, %v1002, 0
    %v1351 = vsel %vm1025, %v1003, 0
    %v1354 = vsel %vm1025, %v1004, 0
    %v1357 = vsel %vm1025, %v1005, 0
    %v1360 = vsel %vm1025, %v1006, 0
    %v1363 = vsel %vm1025, %v1007, 0
    %v1366 = vsel %vm1025, %v1008, 0
    %v1369 = vsel %vm1025, %v1009, 0
    %v1372 = vsel %vm1025, %v1010, 0
    %v1375 = vsel %vm1025, %v1011, 0
    %v1378 = vsel %vm1025, %v1012, 0
    %v1381 = vsel %vm1025, %v1013, 0
    %v1384 = vsel %vm1025, %v1014, 0
    %v1387 = vsel %vm1025, %v1015, 0
    %v1390 = vsel %vm1025, %v1016, 0
    %v1393 = vsel %vm1025, %v1017, 0
    %v1396 = vsel %vm1025, %v1018, 0
    %v1399 = vsel %vm1025, %v1019, 0
    %v1402 = vsel %vm1025, %v1020, 0
    %v1405 = vsel %vm1025, %v1021, 0
    %v1408 = vsel %vm1025, %v1022, 0
    %v1411 = vsel %vm1025, %v1023, 0
    %1413 = vmatprep.subr.mxu0 0.0
    %1414 = vmatpush1.xpose.msra.mxu0 %v1030
    %1415 = vmatprep.subr.mxu0 0.0
    %1416 = vmatpush1.xpose.msra.mxu0 %v1033
    %1417 = vmatprep.subr.mxu0 0.0
    %1418 = vmatpush1.xpose.msra.mxu0 %v1036
    %1419 = vmatprep.subr.mxu0 0.0
    %1420 = vmatpush1.xpose.msra.mxu0 %v1039
    %1421 = vmatprep.subr.mxu0 0.0
    %1422 = vmatpush1.xpose.msra.mxu0 %v1042
    %1423 = vmatprep.subr.mxu0 0.0
    %1424 = vmatpush1.xpose.msra.mxu0 %v1045
    %1425 = vmatprep.subr.mxu0 0.0
    %1426 = vmatpush1.xpose.msra.mxu0 %v1048
    %1427 = vmatprep.subr.mxu0 0.0
    %1428 = vmatpush1.xpose.msra.mxu0 %v1051
    %1429 = vmatprep.subr.mxu0 0.0
    %1430 = vmatpush1.xpose.msra.mxu0 %v1054
    %1431 = vmatprep.subr.mxu0 0.0
    %1432 = vmatpush1.xpose.msra.mxu0 %v1057
    %1433 = vmatprep.subr.mxu0 0.0
    %1434 = vmatpush1.xpose.msra.mxu0 %v1060
    %1435 = vmatprep.subr.mxu0 0.0
    %1436 = vmatpush1.xpose.msra.mxu0 %v1063
    %1437 = vmatprep.subr.mxu0 0.0
    %1438 = vmatpush1.xpose.msra.mxu0 %v1066
    %1439 = vmatprep.subr.mxu0 0.0
    %1440 = vmatpush1.xpose.msra.mxu0 %v1069
    %1441 = vmatprep.subr.mxu0 0.0
    %1442 = vmatpush1.xpose.msra.mxu0 %v1072
    %1443 = vmatprep.subr.mxu0 0.0
    %1444 = vmatpush1.xpose.msra.mxu0 %v1075
    %1445 = vmatprep.subr.mxu0 0.0
    %1446 = vmatpush1.xpose.msra.mxu0 %v1078
    %1447 = vmatprep.subr.mxu0 0.0
    %1448 = vmatpush1.xpose.msra.mxu0 %v1081
    %1449 = vmatprep.subr.mxu0 0.0
    %1450 = vmatpush1.xpose.msra.mxu0 %v1084
    %1451 = vmatprep.subr.mxu0 0.0
    %1452 = vmatpush1.xpose.msra.mxu0 %v1087
    %1453 = vmatprep.subr.mxu0 0.0
    %1454 = vmatpush1.xpose.msra.mxu0 %v1090
    %1455 = vmatprep.subr.mxu0 0.0
    %1456 = vmatpush1.xpose.msra.mxu0 %v1093
    %1457 = vmatprep.subr.mxu0 0.0
    %1458 = vmatpush1.xpose.msra.mxu0 %v1096
    %1459 = vmatprep.subr.mxu0 0.0
    %1460 = vmatpush1.xpose.msra.mxu0 %v1099
    %1461 = vmatprep.subr.mxu0 0.0
    %1462 = vmatpush1.xpose.msra.mxu0 %v1102
    %1463 = vmatprep.subr.mxu0 0.0
    %1464 = vmatpush1.xpose.msra.mxu0 %v1105
    %1465 = vmatprep.subr.mxu0 0.0
    %1466 = vmatpush1.xpose.msra.mxu0 %v1108
    %1467 = vmatprep.subr.mxu0 0.0
    %1468 = vmatpush1.xpose.msra.mxu0 %v1111
    %1469 = vmatprep.subr.mxu0 0.0
    %1470 = vmatpush1.xpose.msra.mxu0 %v1114
    %1471 = vmatprep.subr.mxu0 0.0
    %1472 = vmatpush1.xpose.msra.mxu0 %v1117
    %1473 = vmatprep.subr.mxu0 0.0
    %1474 = vmatpush1.xpose.msra.mxu0 %v1120
    %1475 = vmatprep.subr.mxu0 0.0
    %1476 = vmatpush1.xpose.msra.mxu0 %v1123
    %1477 = vmatprep.mubr.f32.mxu0 0.0
    %1478 = vmatmul.mubr.f32.gmra.mrb[0].mxu0 %v1027
    %v1479 = vpop.f32.mrb[0].mxu0
    %v1480 = vadd.f32 0.0, %v1479
    %v1481 = vpop.f32.mrb[0].mxu0
    %v1482 = vadd.f32 0.0, %v1481
    %1483 = vdwg.mxu0
    %1484 = vmatprep.subr.mxu0 0.0
    %1485 = vmatpush1.xpose.msra.mxu0 %v1126
    %1486 = vmatprep.subr.mxu0 0.0
    %1487 = vmatpush1.xpose.msra.mxu0 %v1129
    %1488 = vmatprep.subr.mxu0 0.0
    %1489 = vmatpush1.xpose.msra.mxu0 %v1132
    %1490 = vmatprep.subr.mxu0 0.0
    %1491 = vmatpush1.xpose.msra.mxu0 %v1135
    %1492 = vmatprep.subr.mxu0 0.0
    %1493 = vmatpush1.xpose.msra.mxu0 %v1138
    %1494 = vmatprep.subr.mxu0 0.0
    %1495 = vmatpush1.xpose.msra.mxu0 %v1141
    %1496 = vmatprep.subr.mxu0 0.0
    %1497 = vmatpush1.xpose.msra.mxu0 %v1144
    %1498 = vmatprep.subr.mxu0 0.0
    %1499 = vmatpush1.xpose.msra.mxu0 %v1147
    %1500 = vmatprep.subr.mxu0 0.0
    %1501 = vmatpush1.xpose.msra.mxu0 %v1150
    %1502 = vmatprep.subr.mxu0 0.0
    %1503 = vmatpush1.xpose.msra.mxu0 %v1153
    %1504 = vmatprep.subr.mxu0 0.0
    %1505 = vmatpush1.xpose.msra.mxu0 %v1156
    %1506 = vmatprep.subr.mxu0 0.0
    %1507 = vmatpush1.xpose.msra.mxu0 %v1159
    %1508 = vmatprep.subr.mxu0 0.0
    %1509 = vmatpush1.xpose.msra.mxu0 %v1162
    %1510 = vmatprep.subr.mxu0 0.0
    %1511 = vmatpush1.xpose.msra.mxu0 %v1165
    %1512 = vmatprep.subr.mxu0 0.0
    %1513 = vmatpush1.xpose.msra.mxu0 %v1168
    %1514 = vmatprep.subr.mxu0 0.0
    %1515 = vmatpush1.xpose.msra.mxu0 %v1171
    %1516 = vmatprep.subr.mxu0 0.0
    %1517 = vmatpush1.xpose.msra.mxu0 %v1174
    %1518 = vmatprep.subr.mxu0 0.0
    %1519 = vmatpush1.xpose.msra.mxu0 %v1177
    %1520 = vmatprep.subr.mxu0 0.0
    %1521 = vmatpush1.xpose.msra.mxu0 %v1180
    %1522 = vmatprep.subr.mxu0 0.0
    %1523 = vmatpush1.xpose.msra.mxu0 %v1183
    %1524 = vmatprep.subr.mxu0 0.0
    %1525 = vmatpush1.xpose.msra.mxu0 %v1186
    %1526 = vmatprep.subr.mxu0 0.0
    %1527 = vmatpush1.xpose.msra.mxu0 %v1189
    %1528 = vmatprep.subr.mxu0 0.0
    %1529 = vmatpush1.xpose.msra.mxu0 %v1192
    %1530 = vmatprep.subr.mxu0 0.0
    %1531 = vmatpush1.xpose.msra.mxu0 %v1195
    %1532 = vmatprep.subr.mxu0 0.0
    %1533 = vmatpush1.xpose.msra.mxu0 %v1198
    %1534 = vmatprep.subr.mxu0 0.0
    %1535 = vmatpush1.xpose.msra.mxu0 %v1201
    %1536 = vmatprep.subr.mxu0 0.0
    %1537 = vmatpush1.xpose.msra.mxu0 %v1204
    %1538 = vmatprep.subr.mxu0 0.0
    %1539 = vmatpush1.xpose.msra.mxu0 %v1207
    %1540 = vmatprep.subr.mxu0 0.0
    %1541 = vmatpush1.xpose.msra.mxu0 %v1210
    %1542 = vmatprep.subr.mxu0 0.0
    %1543 = vmatpush1.xpose.msra.mxu0 %v1213
    %1544 = vmatprep.subr.mxu0 0.0
    %1545 = vmatpush1.xpose.msra.mxu0 %v1216
    %1546 = vmatprep.subr.mxu0 0.0
    %1547 = vmatpush1.xpose.msra.mxu0 %v1219
    %1548 = vmatprep.mubr.f32.mxu0 0.0
    %1549 = vmatmul.mubr.f32.gmra.mrb[0].mxu0 %v1027
    %v1550 = vpop.f32.mrb[0].mxu0
    %v1551 = vadd.f32 0.0, %v1550
    %v1552 = vpop.f32.mrb[0].mxu0
    %v1553 = vadd.f32 0.0, %v1552
    %1554 = vdwg.mxu0
    %1555 = vmatprep.subr.mxu0 0.0
    %1556 = vmatpush1.xpose.msra.mxu0 %v1222
    %1557 = vmatprep.subr.mxu0 0.0
    %1558 = vmatpush1.xpose.msra.mxu0 %v1225
    %1559 = vmatprep.subr.mxu0 0.0
    %1560 = vmatpush1.xpose.msra.mxu0 %v1228
    %1561 = vmatprep.subr.mxu0 0.0
    %1562 = vmatpush1.xpose.msra.mxu0 %v1231
    %1563 = vmatprep.subr.mxu0 0.0
    %1564 = vmatpush1.xpose.msra.mxu0 %v1234
    %1565 = vmatprep.subr.mxu0 0.0
    %1566 = vmatpush1.xpose.msra.mxu0 %v1237
    %1567 = vmatprep.subr.mxu0 0.0
    %1568 = vmatpush1.xpose.msra.mxu0 %v1240
    %1569 = vmatprep.subr.mxu0 0.0
    %1570 = vmatpush1.xpose.msra.mxu0 %v1243
    %1571 = vmatprep.subr.mxu0 0.0
    %1572 = vmatpush1.xpose.msra.mxu0 %v1246
    %1573 = vmatprep.subr.mxu0 0.0
    %1574 = vmatpush1.xpose.msra.mxu0 %v1249
    %1575 = vmatprep.subr.mxu0 0.0
    %1576 = vmatpush1.xpose.msra.mxu0 %v1252
    %1577 = vmatprep.subr.mxu0 0.0
    %1578 = vmatpush1.xpose.msra.mxu0 %v1255
    %1579 = vmatprep.subr.mxu0 0.0
    %1580 = vmatpush1.xpose.msra.mxu0 %v1258
    %1581 = vmatprep.subr.mxu0 0.0
    %1582 = vmatpush1.xpose.msra.mxu0 %v1261
    %1583 = vmatprep.subr.mxu0 0.0
    %1584 = vmatpush1.xpose.msra.mxu0 %v1264
    %1585 = vmatprep.subr.mxu0 0.0
    %1586 = vmatpush1.xpose.msra.mxu0 %v1267
    %1587 = vmatprep.subr.mxu0 0.0
    %1588 = vmatpush1.xpose.msra.mxu0 %v1270
    %1589 = vmatprep.subr.mxu0 0.0
    %1590 = vmatpush1.xpose.msra.mxu0 %v1273
    %1591 = vmatprep.subr.mxu0 0.0
    %1592 = vmatpush1.xpose.msra.mxu0 %v1276
    %1593 = vmatprep.subr.mxu0 0.0
    %1594 = vmatpush1.xpose.msra.mxu0 %v1279
    %1595 = vmatprep.subr.mxu0 0.0
    %1596 = vmatpush1.xpose.msra.mxu0 %v1282
    %1597 = vmatprep.subr.mxu0 0.0
    %1598 = vmatpush1.xpose.msra.mxu0 %v1285
    %1599 = vmatprep.subr.mxu0 0.0
    %1600 = vmatpush1.xpose.msra.mxu0 %v1288
    %1601 = vmatprep.subr.mxu0 0.0
    %1602 = vmatpush1.xpose.msra.mxu0 %v1291
    %1603 = vmatprep.subr.mxu0 0.0
    %1604 = vmatpush1.xpose.msra.mxu0 %v1294
    %1605 = vmatprep.subr.mxu0 0.0
    %1606 = vmatpush1.xpose.msra.mxu0 %v1297
    %1607 = vmatprep.subr.mxu0 0.0
    %1608 = vmatpush1.xpose.msra.mxu0 %v1300
    %1609 = vmatprep.subr.mxu0 0.0
    %1610 = vmatpush1.xpose.msra.mxu0 %v1303
    %1611 = vmatprep.subr.mxu0 0.0
    %1612 = vmatpush1.xpose.msra.mxu0 %v1306
    %1613 = vmatprep.subr.mxu0 0.0
    %1614 = vmatpush1.xpose.msra.mxu0 %v1309
    %1615 = vmatprep.subr.mxu0 0.0
    %1616 = vmatpush1.xpose.msra.mxu0 %v1312
    %1617 = vmatprep.subr.mxu0 0.0
    %1618 = vmatpush1.xpose.msra.mxu0 %v1315
    %1619 = vmatprep.mubr.f32.mxu0 0.0
    %1620 = vmatmul.mubr.f32.gmra.mrb[0].mxu0 %v1027
    %v1621 = vpop.f32.mrb[0].mxu0
    %v1622 = vadd.f32 0.0, %v1621
    %v1623 = vpop.f32.mrb[0].mxu0
    %v1624 = vadd.f32 0.0, %v1623
    %1625 = vdwg.mxu0
    %1626 = vmatprep.subr.mxu0 0.0
    %1627 = vmatpush1.xpose.msra.mxu0 %v1318
    %1628 = vmatprep.subr.mxu0 0.0
    %1629 = vmatpush1.xpose.msra.mxu0 %v1321
    %1630 = vmatprep.subr.mxu0 0.0
    %1631 = vmatpush1.xpose.msra.mxu0 %v1324
    %1632 = vmatprep.subr.mxu0 0.0
    %1633 = vmatpush1.xpose.msra.mxu0 %v1327
    %1634 = vmatprep.subr.mxu0 0.0
    %1635 = vmatpush1.xpose.msra.mxu0 %v1330
    %1636 = vmatprep.subr.mxu0 0.0
    %1637 = vmatpush1.xpose.msra.mxu0 %v1333
    %1638 = vmatprep.subr.mxu0 0.0
    %1639 = vmatpush1.xpose.msra.mxu0 %v1336
    %1640 = vmatprep.subr.mxu0 0.0
    %1641 = vmatpush1.xpose.msra.mxu0 %v1339
    %1642 = vmatprep.subr.mxu0 0.0
    %1643 = vmatpush1.xpose.msra.mxu0 %v1342
    %1644 = vmatprep.subr.mxu0 0.0
    %1645 = vmatpush1.xpose.msra.mxu0 %v1345
    %1646 = vmatprep.subr.mxu0 0.0
    %1647 = vmatpush1.xpose.msra.mxu0 %v1348
    %1648 = vmatprep.subr.mxu0 0.0
    %1649 = vmatpush1.xpose.msra.mxu0 %v1351
    %1650 = vmatprep.subr.mxu0 0.0
    %1651 = vmatpush1.xpose.msra.mxu0 %v1354
    %1652 = vmatprep.subr.mxu0 0.0
    %1653 = vmatpush1.xpose.msra.mxu0 %v1357
    %1654 = vmatprep.subr.mxu0 0.0
    %1655 = vmatpush1.xpose.msra.mxu0 %v1360
    %1656 = vmatprep.subr.mxu0 0.0
    %1657 = vmatpush1.xpose.msra.mxu0 %v1363
    %1658 = vmatprep.subr.mxu0 0.0
    %1659 = vmatpush1.xpose.msra.mxu0 %v1366
    %1660 = vmatprep.subr.mxu0 0.0
    %1661 = vmatpush1.xpose.msra.mxu0 %v1369
    %1662 = vmatprep.subr.mxu0 0.0
    %1663 = vmatpush1.xpose.msra.mxu0 %v1372
    %1664 = vmatprep.subr.mxu0 0.0
    %1665 = vmatpush1.xpose.msra.mxu0 %v1375
    %1666 = vmatprep.subr.mxu0 0.0
    %1667 = vmatpush1.xpose.msra.mxu0 %v1378
    %1668 = vmatprep.subr.mxu0 0.0
    %1669 = vmatpush1.xpose.msra.mxu0 %v1381
    %1670 = vmatprep.subr.mxu0 0.0
    %1671 = vmatpush1.xpose.msra.mxu0 %v1384
    %1672 = vmatprep.subr.mxu0 0.0
    %1673 = vmatpush1.xpose.msra.mxu0 %v1387
    %1674 = vmatprep.subr.mxu0 0.0
    %1675 = vmatpush1.xpose.msra.mxu0 %v1390
    %1676 = vmatprep.subr.mxu0 0.0
    %1677 = vmatpush1.xpose.msra.mxu0 %v1393
    %1678 = vmatprep.subr.mxu0 0.0
    %1679 = vmatpush1.xpose.msra.mxu0 %v1396
    %1680 = vmatprep.subr.mxu0 0.0
    %1681 = vmatpush1.xpose.msra.mxu0 %v1399
    %1682 = vmatprep.subr.mxu0 0.0
    %1683 = vmatpush1.xpose.msra.mxu0 %v1402
    %1684 = vmatprep.subr.mxu0 0.0
    %1685 = vmatpush1.xpose.msra.mxu0 %v1405
    %1686 = vmatprep.subr.mxu0 0.0
    %1687 = vmatpush1.xpose.msra.mxu0 %v1408
    %1688 = vmatprep.subr.mxu0 0.0
    %1689 = vmatpush1.xpose.msra.mxu0 %v1411
    %1690 = vmatprep.mubr.f32.mxu0 0.0
    %1691 = vmatmul.mubr.f32.gmra.mrb[0].mxu0 %v1027
    %v1692 = vpop.f32.mrb[0].mxu0
    %v1693 = vadd.f32 0.0, %v1692
    %v1694 = vpop.f32.mrb[0].mxu0
    %v1695 = vadd.f32 0.0, %v1694
    %1696 = vdwg.mxu0
    %s1697 = sld [smem:[#allocation2]]
    %v1698 = vmul.f32 %v167, %v167
    %v1707 = vcombine.low %v1480, %v1482
    %v1708 = vcombine.low %v1551, %v1553
    %v1709 = vcombine.low %v1622, %v1624
    %v1710 = vcombine.low %v1693, %v1695
    %v1712 = vunpack.c.l.s4 1966171168
    %v1713 = vunpack.c.0.s8 %v1712
    %v1714 = vlaneseq
    %v1715 = vshrl.u32 %v1714, 7
    %v1716 = vsub.s32 %v1713, %v1715
    %v1717 = vrot.slane %v1707, %v1716
    %v1719 = vunpack.c.l.s4 1966171168
    %v1720 = vunpack.c.0.s8 %v1719
    %v1721 = vlaneseq
    %v1722 = vshrl.u32 %v1721, 7
    %v1723 = vsub.s32 %v1720, %v1722
    %v1724 = vrot.slane %v1708, %v1723
    %v1726 = vunpack.c.l.s4 1966171168
    %v1727 = vunpack.c.0.s8 %v1726
    %v1728 = vlaneseq
    %v1729 = vshrl.u32 %v1728, 7
    %v1730 = vsub.s32 %v1727, %v1729
    %v1731 = vrot.slane %v1709, %v1730
    %v1733 = vunpack.c.l.s4 1966171168
    %v1734 = vunpack.c.0.s8 %v1733
    %v1735 = vlaneseq
    %v1736 = vshrl.u32 %v1735, 7
    %v1737 = vsub.s32 %v1734, %v1736
    %v1738 = vrot.slane %v1710, %v1737
    %v1739 = vcombine.low %v1717, %v1724
    %v1740 = vcombine.low %v1731, %v1738
    %v1742 = vunpack.c.l.s4 1966171168
    %v1743 = vunpack.c.0.s8 %v1742
    %v1744 = vlaneseq
    %v1745 = vshrl.u32 %v1744, 7
    %v1746 = vsub.s32 %v1743, %v1745
    %v1747 = vrot.slane %v1739, %v1746
    %v1749 = vunpack.c.l.s4 1966171168
    %v1750 = vunpack.c.0.s8 %v1749
    %v1751 = vlaneseq
    %v1752 = vshrl.u32 %v1751, 7
    %v1753 = vsub.s32 %v1750, %v1752
    %v1754 = vrot.slane %v1740, %v1753
    %v1755 = vcombine.low %v1747, %v1754
    %v1757 = vmul.f32 %v1698, %v1755
    %v1758 = vstv %s1697
    %v1759 = vmul.f32 %v1758, %v167
    %v1760 = vadd.f32 %v1757, %v1759
    %1761 = vst [vmem:[#allocation6] sm:$0xff] %v1760
    // Predicated region
    $region30: #{tpu_custom_call.1} parent=1 // pred_check
      _
    $region31: #{tpu_custom_call.1} parent=1 // pred_check_branch
      %1763 = sbr.rel (0) target = $region33
    $region32: #{tpu_custom_call.1} parent=1 // pred_region
      %s1765 = ssub.s32 128, 128
      %1766 = vsyncadd [#allocation5], %s1765
      %s1768 = sshll.u32 [#allocation6], 4
      %s1769 = int_to_ptr.vmem [resolvable:$true] %s1768
      %1771 = dma.vmem_to_hbm [thread:$0]  %s1769, 128, %s6, [#allocation5]
    $region33: #{tpu_custom_call.1} parent=1 // pred_fallthru
      _
    // Predicated region
    $region34: #{tpu_custom_call.1} parent=1 // pred_check
      _
    $region35: #{tpu_custom_call.1} parent=1 // pred_check_branch
      %1773 = sbr.rel (0) target = $region37
    $region36: #{tpu_custom_call.1} parent=1 // pred_region
      %1774 = dma.done [#allocation5], 128
    $region37: #{tpu_custom_call.1} parent=1 // pred_fallthru
      _
    %1775 = vsyncpa [#allocation4], 1
    %1776 = vsyncpa [#allocation5], 1

</llo_original>
